<compile_context>
chip_gen: v5e
topology: v5e:2x2
jax: 0.10.0
libtpu: 0.0.40
codegen_flags: <defaults>
</compile_context>

<pallas_src>
import jax
import jax.numpy as jnp
from jax.experimental import pallas as pl
from jax.experimental.pallas import tpu as pltpu


def _make_decoder_kernel(n_layer: int, T: int, B: int, h_dim: int, H: int,
                         i_dim: int, compute_dtype):
    """Kernel: (tokens[SMEM], emb, {w_ih_T, w_hh_T, bias}*n_layer) -> (B, T*H)."""
    G = 4 * H

    def kernel(tok_ref, emb_ref, *refs):
        w_refs = refs[:3 * n_layer]            # per layer: w_ih_T, w_hh_T, bias
        out_ref = refs[3 * n_layer]            # (B, T*H) f32
        proj_ref = refs[3 * n_layer + 1]       # scratch (i_dim, 4H) f32
        pre_ref = refs[3 * n_layer + 2]        # scratch (B, T*4H) f32

        # ---- Fused embedding + layer-0 input projection (one MXU op). ------
        # proj[v] = emb[v] @ W_ih0^T + (b_ih0 + b_hh0). Gathering afterwards is
        # exact: (E @ W^T + b)[tok] == emb[tok] @ W^T + b. padding_idx row of
        # emb is zero, so its projection is just the bias (matches LSTMCell).
        proj_ref[...] = (
            jnp.dot(emb_ref[...], w_refs[0][...],
                    preferred_element_type=jnp.float32)
            + w_refs[2][...])

        # ---- Token-driven row gather into a lane-dense (B, T*4H) scratch. ---
        # B*T small row copies, all off the recurrence critical path.
        for b in range(B):
            for t in range(T):
                tok = tok_ref[b, t]                                  # SMEM scalar
                pre_ref[b:b + 1, t * G:(t + 1) * G] = proj_ref[pl.ds(tok, 1), :]

        # ---- Hoisted bias broadcasts for layers n>0 (once per layer, not per
        # step; JAX does not CSE broadcast_in_dim). ----
        bias_b = [None] + [
            jnp.broadcast_to(w_refs[3 * n + 2][...], (B, G))
            for n in range(1, n_layer)
        ]

        zero_f32 = jnp.zeros((B, H), jnp.float32)
        c = [zero_f32 for _ in range(n_layer)]                       # f32 state
        h_c = [zero_f32.astype(compute_dtype) for _ in range(n_layer)]  # MXU-operand copies

        # ---- Fully unrolled time loop (T small): recurrence stays in
        # registers, no per-step grid/DMA overhead. ----
        # TODO(synk): for long T switch to lax.fori_loop with VMEM-carried
        #   (n_layer, B, H) state; for large B add a batch grid axis marked
        #   "parallel" so v7x's 2 TensorCores split the batch; for large H
        #   (resident weights > ~half of v7x's 64 MiB VMEM) keep weights bf16
        #   and move to an emit_pipeline K-/gate-blocked inner loop.
        h_top = zero_f32
        for t in range(T):
            x_c = None
            for n in range(n_layer):
                # Recurrent dot (K=H); weight refs read at the call site.
                gates = jnp.dot(h_c[n], w_refs[3 * n + 1][...],
                                preferred_element_type=jnp.float32)
                if n == 0:
                    # Layer-0 input projection was precomputed above.
                    gates = gates + pre_ref[:, t * G:(t + 1) * G]
                else:
                    # Two dots instead of a [x, h] lane-concat + one dot.
                    gates = gates + jnp.dot(x_c, w_refs[3 * n][...],
                                            preferred_element_type=jnp.float32)
                    gates = gates + bias_b[n]

                # One EUP pass over the whole (B, 4H) vreg (4H == 128 lanes
                # here, so this is a single-vreg sigmoid); PyTorch gate order
                # (i, f, g, o). NOTE: if scaled, pick H a multiple of 128 so
                # the gate slices below become whole-vreg views.
                sig = jax.nn.sigmoid(gates)
                i_g = sig[:, 0 * H:1 * H]
                f_g = sig[:, 1 * H:2 * H]
                o_g = sig[:, 3 * H:4 * H]
                g_g = jnp.tanh(gates[:, 2 * H:3 * H])

                c[n] = f_g * c[n] + i_g * g_g
                h_top = o_g * jnp.tanh(c[n])          # f32 hidden
                h_c[n] = h_top.astype(compute_dtype)  # single cast per layer-step
                x_c = h_c[n]                          # dropout == identity (eval)

            # Direct per-step store of the top-layer hidden (no register
            # accumulation + end-of-kernel lane concat).
            out_ref[:, t * H:(t + 1) * H] = h_top

    return kernel


def rnn_decoder_forward(y_tokens, emb_w, w_ih_list, w_hh_list, b_ih_list,
                        b_hh_list, compute_dtype=jnp.bfloat16):
    """Full RNNDecoder.forward. y_tokens: (B, T) int32. Returns (B, T, H).

    compute_dtype: dtype of MXU operands (bf16 default for v6e/v7x peak;
    pass jnp.float32 for an exact-ish f32 path). Accumulation, gate math and
    h/c state stay f32 on all chips.
    NOTE: MXU/vreg utilization improves up to B multiple of 8 (sublanes) and
    beyond (MXU rows); B=2 here is a toy size.
    """
    B, T = y_tokens.shape
    i_dim, h_dim = emb_w.shape
    n_layer = len(w_ih_list)
    H = w_hh_list[0].shape[1]

    # One-time weight prep (not on the hot path): transpose to (in, 4H) /
    # (H, 4H), cast matmul operands to compute_dtype, combine biases (f32).
    kernel_args = [y_tokens.astype(jnp.int32), emb_w.astype(compute_dtype)]
    for n in range(n_layer):
        kernel_args.append(jnp.transpose(w_ih_list[n]).astype(compute_dtype))
        kernel_args.append(jnp.transpose(w_hh_list[n]).astype(compute_dtype))
        kernel_args.append(
            (b_ih_list[n] + b_hh_list[n]).reshape(1, 4 * H).astype(jnp.float32))

    kernel = _make_decoder_kernel(n_layer, T, B, h_dim, H, i_dim, compute_dtype)

    smem_spec = pl.BlockSpec(memory_space=pltpu.MemorySpace.SMEM)
    vmem_spec = pl.BlockSpec(memory_space=pltpu.MemorySpace.VMEM)

    out_slab = pl.pallas_call(
        kernel,
        out_shape=jax.ShapeDtypeStruct((B, T * H), jnp.float32),
        in_specs=[smem_spec] + [vmem_spec] * (len(kernel_args) - 1),
        out_specs=vmem_spec,
        scratch_shapes=[
            pltpu.VMEM((i_dim, 4 * H), jnp.float32),   # projected embedding table
            pltpu.VMEM((B, T * 4 * H), jnp.float32),   # layer-0 gate precomp
        ],
    )(*kernel_args)

    # Free contiguous reshape back to (B, T, H) == torch.stack(dim=1) layout.
    return out_slab.reshape(B, T, H)


def _reference_forward(y_tokens, emb_w, w_ih_list, w_hh_list, b_ih_list, b_hh_list):
    """Pure-JAX f32 reference matching PyTorch nn.LSTMCell semantics."""
    B, T = y_tokens.shape
    n_layer = len(w_ih_list)
    H = w_hh_list[0].shape[1]
    y_emb = jnp.take(emb_w, y_tokens, axis=0)
    h = [jnp.zeros((B, H), jnp.float32) for _ in range(n_layer)]
    c = [jnp.zeros((B, H), jnp.float32) for _ in range(n_layer)]
    outs = []
    for t in range(T):
        x = y_emb[:, t, :]
        for n in range(n_layer):
            gates = x @ w_ih_list[n].T + b_ih_list[n] + h[n] @ w_hh_list[n].T + b_hh_list[n]
            i_g, f_g, g_g, o_g = jnp.split(gates, 4, axis=1)
            i_g = jax.nn.sigmoid(i_g)
            f_g = jax.nn.sigmoid(f_g)
            g_g = jnp.tanh(g_g)
            o_g = jax.nn.sigmoid(o_g)
            c[n] = f_g * c[n] + i_g * g_g
            h[n] = o_g * jnp.tanh(c[n])
            x = h[n]
        outs.append(x)
    return jnp.stack(outs, axis=1)


if __name__ == "__main__":
    # Module config (small): i_dim=16 vocab, h_dim=32 embed, h_units=32, n_layer=2
    i_dim, h_dim, h_units, n_layer = 16, 32, 32, 2
    B, T = 2, 8

    key = jax.random.PRNGKey(0)
    keys = jax.random.split(key, 2 + 4 * n_layer)

    # Embedding table; padding_idx=0 -> zero row.
    emb_w = 0.1 * jax.random.normal(keys[0], (i_dim, h_dim), jnp.float32)
    emb_w = emb_w.at[0].set(0.0)

    w_ih_list, w_hh_list, b_ih_list, b_hh_list = [], [], [], []
    for n in range(n_layer):
        in_dim = h_dim if n == 0 else h_units
        kw = jax.random.split(keys[2 + n], 4)
        w_ih_list.append(0.1 * jax.random.normal(kw[0], (4 * h_units, in_dim), jnp.float32))
        w_hh_list.append(0.1 * jax.random.normal(kw[1], (4 * h_units, h_units), jnp.float32))
        b_ih_list.append(0.1 * jax.random.normal(kw[2], (4 * h_units,), jnp.float32))
        b_hh_list.append(0.1 * jax.random.normal(kw[3], (4 * h_units,), jnp.float32))

    # Token ids (B, T), include some padding-index zeros.
    y_tokens = jax.random.randint(keys[1], (B, T), 0, i_dim, dtype=jnp.int32)
    y_tokens = y_tokens.at[:, -1].set(0)

    ref = _reference_forward(y_tokens, emb_w, w_ih_list, w_hh_list, b_ih_list, b_hh_list)

    # f32 MXU-operand path: exact-ish match vs reference.
    out_f32 = rnn_decoder_forward(y_tokens, emb_w, w_ih_list, w_hh_list,
                                  b_ih_list, b_hh_list, compute_dtype=jnp.float32)
    out_f32 = jax.block_until_ready(out_f32)
    assert out_f32.shape == (B, T, h_units)
    assert jnp.allclose(out_f32, ref, atol=1e-5, rtol=1e-5), "f32 mismatch vs reference"

    # bf16 MXU-operand path (default; v6e/v7x peak throughput), f32 accumulation/state.
    out_bf16 = rnn_decoder_forward(y_tokens, emb_w, w_ih_list, w_hh_list,
                                   b_ih_list, b_hh_list)
    out_bf16 = jax.block_until_ready(out_bf16)
    assert jnp.allclose(out_bf16, ref, atol=5e-2, rtol=5e-2), "bf16 mismatch vs reference"

    print("KERNEL_OK")
</pallas_src>

<mosaic_0001>
module attributes {stable_mosaic.version = 11 : i64} {
  func.func @kernel(%arg0: memref<2x8xi32, #tpu.memory_space<smem>>, %arg1: memref<16x32xf32, #tpu.memory_space<vmem>>, %arg2: memref<32x128xf32, #tpu.memory_space<vmem>>, %arg3: memref<32x128xf32, #tpu.memory_space<vmem>>, %arg4: memref<1x128xf32, #tpu.memory_space<vmem>>, %arg5: memref<32x128xf32, #tpu.memory_space<vmem>>, %arg6: memref<32x128xf32, #tpu.memory_space<vmem>>, %arg7: memref<1x128xf32, #tpu.memory_space<vmem>>, %arg8: memref<2x256xf32, #tpu.memory_space<vmem>>, %arg9: memref<16x128xf32, #tpu.memory_space<vmem>>, %arg10: memref<2x1024xf32, #tpu.memory_space<vmem>>) attributes {dimension_semantics = [], scalar_prefetch = 0 : i64, scratch_operands = 2 : i64, tpu.core_type = #tpu.core_type<tc>} {
    %c0 = arith.constant 0 : index
    %c0_0 = arith.constant 0 : index
    %0 = vector.load %arg1[%c0, %c0_0] : memref<16x32xf32, #tpu.memory_space<vmem>>, vector<16x32xf32>
    %c0_1 = arith.constant 0 : index
    %c0_2 = arith.constant 0 : index
    %1 = vector.load %arg2[%c0_1, %c0_2] : memref<32x128xf32, #tpu.memory_space<vmem>>, vector<32x128xf32>
    %cst = arith.constant dense<0.000000e+00> : vector<16x128xf32>
    %2 = tpu.matmul %0, %1, %cst {dimension_numbers = #tpu.dot_dimension_numbers<[1], [0], [0], [1], [0, 0, 1, 1], [], []>} : vector<16x32xf32>, vector<32x128xf32>, vector<16x128xf32> -> vector<16x128xf32>
    %c0_3 = arith.constant 0 : index
    %c0_4 = arith.constant 0 : index
    %3 = vector.load %arg4[%c0_3, %c0_4] : memref<1x128xf32, #tpu.memory_space<vmem>>, vector<1x128xf32>
    %4 = vector.broadcast %3 : vector<1x128xf32> to vector<16x128xf32>
    %5 = arith.addf %2, %4 : vector<16x128xf32>
    %c0_5 = arith.constant 0 : index
    %c0_6 = arith.constant 0 : index
    %6 = vector.load %arg9[%c0_5, %c0_6] : memref<16x128xf32, #tpu.memory_space<vmem>>, vector<16x128xf32>
    tpu.vector_store %arg9[%c0_5, %c0_6], %5 {strides = array<i32>} : memref<16x128xf32, #tpu.memory_space<vmem>>, vector<16x128xf32>,
    %c0_7 = arith.constant 0 : index
    %c0_8 = arith.constant 0 : index
    %7 = memref.load %arg0[%c0_7, %c0_8] : memref<2x8xi32, #tpu.memory_space<smem>>
    %8 = arith.index_cast %7 : i32 to index
    %c0_9 = arith.constant 0 : index
    %9 = vector.load %arg9[%8, %c0_9] : memref<16x128xf32, #tpu.memory_space<vmem>>, vector<1x128xf32>
    %c0_10 = arith.constant 0 : index
    %c0_11 = arith.constant 0 : index
    %10 = vector.load %arg10[%c0_10, %c0_11] : memref<2x1024xf32, #tpu.memory_space<vmem>>, vector<1x128xf32>
    tpu.vector_store %arg10[%c0_10, %c0_11], %9 {strides = array<i32>} : memref<2x1024xf32, #tpu.memory_space<vmem>>, vector<1x128xf32>,
    %c0_12 = arith.constant 0 : index
    %c1 = arith.constant 1 : index
    %11 = memref.load %arg0[%c0_12, %c1] : memref<2x8xi32, #tpu.memory_space<smem>>
    %12 = arith.index_cast %11 : i32 to index
    %c0_13 = arith.constant 0 : index
    %13 = vector.load %arg9[%12, %c0_13] : memref<16x128xf32, #tpu.memory_space<vmem>>, vector<1x128xf32>
    %c0_14 = arith.constant 0 : index
    %c128 = arith.constant 128 : index
    %14 = vector.load %arg10[%c0_14, %c128] : memref<2x1024xf32, #tpu.memory_space<vmem>>, vector<1x128xf32>
    tpu.vector_store %arg10[%c0_14, %c128], %13 {strides = array<i32>} : memref<2x1024xf32, #tpu.memory_space<vmem>>, vector<1x128xf32>,
    %c0_15 = arith.constant 0 : index
    %c2 = arith.constant 2 : index
    %15 = memref.load %arg0[%c0_15, %c2] : memref<2x8xi32, #tpu.memory_space<smem>>
    %16 = arith.index_cast %15 : i32 to index
    %c0_16 = arith.constant 0 : index
    %17 = vector.load %arg9[%16, %c0_16] : memref<16x128xf32, #tpu.memory_space<vmem>>, vector<1x128xf32>
    %c0_17 = arith.constant 0 : index
    %c256 = arith.constant 256 : index
    %18 = vector.load %arg10[%c0_17, %c256] : memref<2x1024xf32, #tpu.memory_space<vmem>>, vector<1x128xf32>
    tpu.vector_store %arg10[%c0_17, %c256], %17 {strides = array<i32>} : memref<2x1024xf32, #tpu.memory_space<vmem>>, vector<1x128xf32>,
    %c0_18 = arith.constant 0 : index
    %c3 = arith.constant 3 : index
    %19 = memref.load %arg0[%c0_18, %c3] : memref<2x8xi32, #tpu.memory_space<smem>>
    %20 = arith.index_cast %19 : i32 to index
    %c0_19 = arith.constant 0 : index
    %21 = vector.load %arg9[%20, %c0_19] : memref<16x128xf32, #tpu.memory_space<vmem>>, vector<1x128xf32>
    %c0_20 = arith.constant 0 : index
    %c384 = arith.constant 384 : index
    %22 = vector.load %arg10[%c0_20, %c384] : memref<2x1024xf32, #tpu.memory_space<vmem>>, vector<1x128xf32>
    tpu.vector_store %arg10[%c0_20, %c384], %21 {strides = array<i32>} : memref<2x1024xf32, #tpu.memory_space<vmem>>, vector<1x128xf32>,
    %c0_21 = arith.constant 0 : index
    %c4 = arith.constant 4 : index
    %23 = memref.load %arg0[%c0_21, %c4] : memref<2x8xi32, #tpu.memory_space<smem>>
    %24 = arith.index_cast %23 : i32 to index
    %c0_22 = arith.constant 0 : index
    %25 = vector.load %arg9[%24, %c0_22] : memref<16x128xf32, #tpu.memory_space<vmem>>, vector<1x128xf32>
    %c0_23 = arith.constant 0 : index
    %c512 = arith.constant 512 : index
    %26 = vector.load %arg10[%c0_23, %c512] : memref<2x1024xf32, #tpu.memory_space<vmem>>, vector<1x128xf32>
    tpu.vector_store %arg10[%c0_23, %c512], %25 {strides = array<i32>} : memref<2x1024xf32, #tpu.memory_space<vmem>>, vector<1x128xf32>,
    %c0_24 = arith.constant 0 : index
    %c5 = arith.constant 5 : index
    %27 = memref.load %arg0[%c0_24, %c5] : memref<2x8xi32, #tpu.memory_space<smem>>
    %28 = arith.index_cast %27 : i32 to index
    %c0_25 = arith.constant 0 : index
    %29 = vector.load %arg9[%28, %c0_25] : memref<16x128xf32, #tpu.memory_space<vmem>>, vector<1x128xf32>
    %c0_26 = arith.constant 0 : index
    %c640 = arith.constant 640 : index
    %30 = vector.load %arg10[%c0_26, %c640] : memref<2x1024xf32, #tpu.memory_space<vmem>>, vector<1x128xf32>
    tpu.vector_store %arg10[%c0_26, %c640], %29 {strides = array<i32>} : memref<2x1024xf32, #tpu.memory_space<vmem>>, vector<1x128xf32>,
    %c0_27 = arith.constant 0 : index
    %c6 = arith.constant 6 : index
    %31 = memref.load %arg0[%c0_27, %c6] : memref<2x8xi32, #tpu.memory_space<smem>>
    %32 = arith.index_cast %31 : i32 to index
    %c0_28 = arith.constant 0 : index
    %33 = vector.load %arg9[%32, %c0_28] : memref<16x128xf32, #tpu.memory_space<vmem>>, vector<1x128xf32>
    %c0_29 = arith.constant 0 : index
    %c768 = arith.constant 768 : index
    %34 = vector.load %arg10[%c0_29, %c768] : memref<2x1024xf32, #tpu.memory_space<vmem>>, vector<1x128xf32>
    tpu.vector_store %arg10[%c0_29, %c768], %33 {strides = array<i32>} : memref<2x1024xf32, #tpu.memory_space<vmem>>, vector<1x128xf32>,
    %c0_30 = arith.constant 0 : index
    %c7 = arith.constant 7 : index
    %35 = memref.load %arg0[%c0_30, %c7] : memref<2x8xi32, #tpu.memory_space<smem>>
    %36 = arith.index_cast %35 : i32 to index
    %c0_31 = arith.constant 0 : index
    %37 = vector.load %arg9[%36, %c0_31] : memref<16x128xf32, #tpu.memory_space<vmem>>, vector<1x128xf32>
    %c0_32 = arith.constant 0 : index
    %c896 = arith.constant 896 : index
    %38 = vector.load %arg10[%c0_32, %c896] : memref<2x1024xf32, #tpu.memory_space<vmem>>, vector<1x128xf32>
    tpu.vector_store %arg10[%c0_32, %c896], %37 {strides = array<i32>} : memref<2x1024xf32, #tpu.memory_space<vmem>>, vector<1x128xf32>,
    %c1_33 = arith.constant 1 : index
    %c0_34 = arith.constant 0 : index
    %39 = memref.load %arg0[%c1_33, %c0_34] : memref<2x8xi32, #tpu.memory_space<smem>>
    %40 = arith.index_cast %39 : i32 to index
    %c0_35 = arith.constant 0 : index
    %41 = vector.load %arg9[%40, %c0_35] : memref<16x128xf32, #tpu.memory_space<vmem>>, vector<1x128xf32>
    %c1_36 = arith.constant 1 : index
    %c0_37 = arith.constant 0 : index
    %42 = vector.load %arg10[%c1_36, %c0_37] : memref<2x1024xf32, #tpu.memory_space<vmem>>, vector<1x128xf32>
    tpu.vector_store %arg10[%c1_36, %c0_37], %41 {strides = array<i32>} : memref<2x1024xf32, #tpu.memory_space<vmem>>, vector<1x128xf32>,
    %c1_38 = arith.constant 1 : index
    %c1_39 = arith.constant 1 : index
    %43 = memref.load %arg0[%c1_38, %c1_39] : memref<2x8xi32, #tpu.memory_space<smem>>
    %44 = arith.index_cast %43 : i32 to index
    %c0_40 = arith.constant 0 : index
    %45 = vector.load %arg9[%44, %c0_40] : memref<16x128xf32, #tpu.memory_space<vmem>>, vector<1x128xf32>
    %c1_41 = arith.constant 1 : index
    %c128_42 = arith.constant 128 : index
    %46 = vector.load %arg10[%c1_41, %c128_42] : memref<2x1024xf32, #tpu.memory_space<vmem>>, vector<1x128xf32>
    tpu.vector_store %arg10[%c1_41, %c128_42], %45 {strides = array<i32>} : memref<2x1024xf32, #tpu.memory_space<vmem>>, vector<1x128xf32>,
    %c1_43 = arith.constant 1 : index
    %c2_44 = arith.constant 2 : index
    %47 = memref.load %arg0[%c1_43, %c2_44] : memref<2x8xi32, #tpu.memory_space<smem>>
    %48 = arith.index_cast %47 : i32 to index
    %c0_45 = arith.constant 0 : index
    %49 = vector.load %arg9[%48, %c0_45] : memref<16x128xf32, #tpu.memory_space<vmem>>, vector<1x128xf32>
    %c1_46 = arith.constant 1 : index
    %c256_47 = arith.constant 256 : index
    %50 = vector.load %arg10[%c1_46, %c256_47] : memref<2x1024xf32, #tpu.memory_space<vmem>>, vector<1x128xf32>
    tpu.vector_store %arg10[%c1_46, %c256_47], %49 {strides = array<i32>} : memref<2x1024xf32, #tpu.memory_space<vmem>>, vector<1x128xf32>,
    %c1_48 = arith.constant 1 : index
    %c3_49 = arith.constant 3 : index
    %51 = memref.load %arg0[%c1_48, %c3_49] : memref<2x8xi32, #tpu.memory_space<smem>>
    %52 = arith.index_cast %51 : i32 to index
    %c0_50 = arith.constant 0 : index
    %53 = vector.load %arg9[%52, %c0_50] : memref<16x128xf32, #tpu.memory_space<vmem>>, vector<1x128xf32>
    %c1_51 = arith.constant 1 : index
    %c384_52 = arith.constant 384 : index
    %54 = vector.load %arg10[%c1_51, %c384_52] : memref<2x1024xf32, #tpu.memory_space<vmem>>, vector<1x128xf32>
    tpu.vector_store %arg10[%c1_51, %c384_52], %53 {strides = array<i32>} : memref<2x1024xf32, #tpu.memory_space<vmem>>, vector<1x128xf32>,
    %c1_53 = arith.constant 1 : index
    %c4_54 = arith.constant 4 : index
    %55 = memref.load %arg0[%c1_53, %c4_54] : memref<2x8xi32, #tpu.memory_space<smem>>
    %56 = arith.index_cast %55 : i32 to index
    %c0_55 = arith.constant 0 : index
    %57 = vector.load %arg9[%56, %c0_55] : memref<16x128xf32, #tpu.memory_space<vmem>>, vector<1x128xf32>
    %c1_56 = arith.constant 1 : index
    %c512_57 = arith.constant 512 : index
    %58 = vector.load %arg10[%c1_56, %c512_57] : memref<2x1024xf32, #tpu.memory_space<vmem>>, vector<1x128xf32>
    tpu.vector_store %arg10[%c1_56, %c512_57], %57 {strides = array<i32>} : memref<2x1024xf32, #tpu.memory_space<vmem>>, vector<1x128xf32>,
    %c1_58 = arith.constant 1 : index
    %c5_59 = arith.constant 5 : index
    %59 = memref.load %arg0[%c1_58, %c5_59] : memref<2x8xi32, #tpu.memory_space<smem>>
    %60 = arith.index_cast %59 : i32 to index
    %c0_60 = arith.constant 0 : index
    %61 = vector.load %arg9[%60, %c0_60] : memref<16x128xf32, #tpu.memory_space<vmem>>, vector<1x128xf32>
    %c1_61 = arith.constant 1 : index
    %c640_62 = arith.constant 640 : index
    %62 = vector.load %arg10[%c1_61, %c640_62] : memref<2x1024xf32, #tpu.memory_space<vmem>>, vector<1x128xf32>
    tpu.vector_store %arg10[%c1_61, %c640_62], %61 {strides = array<i32>} : memref<2x1024xf32, #tpu.memory_space<vmem>>, vector<1x128xf32>,
    %c1_63 = arith.constant 1 : index
    %c6_64 = arith.constant 6 : index
    %63 = memref.load %arg0[%c1_63, %c6_64] : memref<2x8xi32, #tpu.memory_space<smem>>
    %64 = arith.index_cast %63 : i32 to index
    %c0_65 = arith.constant 0 : index
    %65 = vector.load %arg9[%64, %c0_65] : memref<16x128xf32, #tpu.memory_space<vmem>>, vector<1x128xf32>
    %c1_66 = arith.constant 1 : index
    %c768_67 = arith.constant 768 : index
    %66 = vector.load %arg10[%c1_66, %c768_67] : memref<2x1024xf32, #tpu.memory_space<vmem>>, vector<1x128xf32>
    tpu.vector_store %arg10[%c1_66, %c768_67], %65 {strides = array<i32>} : memref<2x1024xf32, #tpu.memory_space<vmem>>, vector<1x128xf32>,
    %c1_68 = arith.constant 1 : index
    %c7_69 = arith.constant 7 : index
    %67 = memref.load %arg0[%c1_68, %c7_69] : memref<2x8xi32, #tpu.memory_space<smem>>
    %68 = arith.index_cast %67 : i32 to index
    %c0_70 = arith.constant 0 : index
    %69 = vector.load %arg9[%68, %c0_70] : memref<16x128xf32, #tpu.memory_space<vmem>>, vector<1x128xf32>
    %c1_71 = arith.constant 1 : index
    %c896_72 = arith.constant 896 : index
    %70 = vector.load %arg10[%c1_71, %c896_72] : memref<2x1024xf32, #tpu.memory_space<vmem>>, vector<1x128xf32>
    tpu.vector_store %arg10[%c1_71, %c896_72], %69 {strides = array<i32>} : memref<2x1024xf32, #tpu.memory_space<vmem>>, vector<1x128xf32>,
    %c0_73 = arith.constant 0 : index
    %c0_74 = arith.constant 0 : index
    %71 = vector.load %arg7[%c0_73, %c0_74] : memref<1x128xf32, #tpu.memory_space<vmem>>, vector<1x128xf32>
    %72 = vector.shape_cast %71 : vector<1x128xf32> to vector<1x128xf32>
    %73 = vector.broadcast %72 : vector<1x128xf32> to vector<2x128xf32>
    %cst_75 = arith.constant 0.000000e+00 : f32
    %74 = vector.broadcast %cst_75 : f32 to vector<2x32xf32>
    %c0_76 = arith.constant 0 : index
    %c0_77 = arith.constant 0 : index
    %75 = vector.load %arg3[%c0_76, %c0_77] : memref<32x128xf32, #tpu.memory_space<vmem>>, vector<32x128xf32>
    %cst_78 = arith.constant dense<0.000000e+00> : vector<2x128xf32>
    %76 = tpu.matmul %74, %75, %cst_78 {dimension_numbers = #tpu.dot_dimension_numbers<[1], [0], [0], [1], [0, 0, 1, 1], [], []>} : vector<2x32xf32>, vector<32x128xf32>, vector<2x128xf32> -> vector<2x128xf32>
    %c0_79 = arith.constant 0 : index
    %c0_80 = arith.constant 0 : index
    %77 = vector.load %arg10[%c0_79, %c0_80] : memref<2x1024xf32, #tpu.memory_space<vmem>>, vector<2x128xf32>
    %78 = arith.addf %76, %77 : vector<2x128xf32>
    %79 = arith.negf %78 : vector<2x128xf32>
    %80 = math.exp %79 : vector<2x128xf32>
    %cst_81 = arith.constant 1.000000e+00 : f32
    %81 = vector.broadcast %cst_81 : f32 to vector<2x128xf32>
    %82 = arith.addf %81, %80 : vector<2x128xf32>
    %83 = arith.divf %81, %82 : vector<2x128xf32>
    %84 = vector.extract_strided_slice %83 {offsets = [0, 0], sizes = [2, 32], strides = [1, 1]} : vector<2x128xf32> to vector<2x32xf32>
    %85 = vector.extract_strided_slice %83 {offsets = [0, 32], sizes = [2, 32], strides = [1, 1]} : vector<2x128xf32> to vector<2x32xf32>
    %86 = vector.extract_strided_slice %83 {offsets = [0, 96], sizes = [2, 32], strides = [1, 1]} : vector<2x128xf32> to vector<2x32xf32>
    %87 = vector.extract_strided_slice %78 {offsets = [0, 64], sizes = [2, 32], strides = [1, 1]} : vector<2x128xf32> to vector<2x32xf32>
    %88 = math.tanh %87 : vector<2x32xf32>
    %89 = arith.mulf %85, %74 : vector<2x32xf32>
    %90 = arith.mulf %84, %88 : vector<2x32xf32>
    %91 = arith.addf %89, %90 : vector<2x32xf32>
    %92 = math.tanh %91 : vector<2x32xf32>
    %93 = arith.mulf %86, %92 : vector<2x32xf32>
    %c0_82 = arith.constant 0 : index
    %c0_83 = arith.constant 0 : index
    %94 = vector.load %arg6[%c0_82, %c0_83] : memref<32x128xf32, #tpu.memory_space<vmem>>, vector<32x128xf32>
    %cst_84 = arith.constant dense<0.000000e+00> : vector<2x128xf32>
    %95 = tpu.matmul %74, %94, %cst_84 {dimension_numbers = #tpu.dot_dimension_numbers<[1], [0], [0], [1], [0, 0, 1, 1], [], []>} : vector<2x32xf32>, vector<32x128xf32>, vector<2x128xf32> -> vector<2x128xf32>
    %c0_85 = arith.constant 0 : index
    %c0_86 = arith.constant 0 : index
    %96 = vector.load %arg5[%c0_85, %c0_86] : memref<32x128xf32, #tpu.memory_space<vmem>>, vector<32x128xf32>
    %cst_87 = arith.constant dense<0.000000e+00> : vector<2x128xf32>
    %97 = tpu.matmul %93, %96, %cst_87 {dimension_numbers = #tpu.dot_dimension_numbers<[1], [0], [0], [1], [0, 0, 1, 1], [], []>} : vector<2x32xf32>, vector<32x128xf32>, vector<2x128xf32> -> vector<2x128xf32>
    %98 = arith.addf %95, %97 : vector<2x128xf32>
    %99 = arith.addf %98, %73 : vector<2x128xf32>
    %100 = arith.negf %99 : vector<2x128xf32>
    %101 = math.exp %100 : vector<2x128xf32>
    %cst_88 = arith.constant 1.000000e+00 : f32
    %102 = vector.broadcast %cst_88 : f32 to vector<2x128xf32>
    %103 = arith.addf %102, %101 : vector<2x128xf32>
    %104 = arith.divf %102, %103 : vector<2x128xf32>
    %105 = vector.extract_strided_slice %104 {offsets = [0, 0], sizes = [2, 32], strides = [1, 1]} : vector<2x128xf32> to vector<2x32xf32>
    %106 = vector.extract_strided_slice %104 {offsets = [0, 32], sizes = [2, 32], strides = [1, 1]} : vector<2x128xf32> to vector<2x32xf32>
    %107 = vector.extract_strided_slice %104 {offsets = [0, 96], sizes = [2, 32], strides = [1, 1]} : vector<2x128xf32> to vector<2x32xf32>
    %108 = vector.extract_strided_slice %99 {offsets = [0, 64], sizes = [2, 32], strides = [1, 1]} : vector<2x128xf32> to vector<2x32xf32>
    %109 = math.tanh %108 : vector<2x32xf32>
    %110 = arith.mulf %106, %74 : vector<2x32xf32>
    %111 = arith.mulf %105, %109 : vector<2x32xf32>
    %112 = arith.addf %110, %111 : vector<2x32xf32>
    %113 = math.tanh %112 : vector<2x32xf32>
    %114 = arith.mulf %107, %113 : vector<2x32xf32>
    %c0_89 = arith.constant 0 : index
    %c0_90 = arith.constant 0 : index
    %115 = vector.load %arg8[%c0_89, %c0_90] : memref<2x256xf32, #tpu.memory_space<vmem>>, vector<2x32xf32>
    tpu.vector_store %arg8[%c0_89, %c0_90], %114 {strides = array<i32>} : memref<2x256xf32, #tpu.memory_space<vmem>>, vector<2x32xf32>,
    %c0_91 = arith.constant 0 : index
    %c0_92 = arith.constant 0 : index
    %116 = vector.load %arg3[%c0_91, %c0_92] : memref<32x128xf32, #tpu.memory_space<vmem>>, vector<32x128xf32>
    %cst_93 = arith.constant dense<0.000000e+00> : vector<2x128xf32>
    %117 = tpu.matmul %93, %116, %cst_93 {dimension_numbers = #tpu.dot_dimension_numbers<[1], [0], [0], [1], [0, 0, 1, 1], [], []>} : vector<2x32xf32>, vector<32x128xf32>, vector<2x128xf32> -> vector<2x128xf32>
    %c0_94 = arith.constant 0 : index
    %c128_95 = arith.constant 128 : index
    %118 = vector.load %arg10[%c0_94, %c128_95] : memref<2x1024xf32, #tpu.memory_space<vmem>>, vector<2x128xf32>
    %119 = arith.addf %117, %118 : vector<2x128xf32>
    %120 = arith.negf %119 : vector<2x128xf32>
    %121 = math.exp %120 : vector<2x128xf32>
    %cst_96 = arith.constant 1.000000e+00 : f32
    %122 = vector.broadcast %cst_96 : f32 to vector<2x128xf32>
    %123 = arith.addf %122, %121 : vector<2x128xf32>
    %124 = arith.divf %122, %123 : vector<2x128xf32>
    %125 = vector.extract_strided_slice %124 {offsets = [0, 0], sizes = [2, 32], strides = [1, 1]} : vector<2x128xf32> to vector<2x32xf32>
    %126 = vector.extract_strided_slice %124 {offsets = [0, 32], sizes = [2, 32], strides = [1, 1]} : vector<2x128xf32> to vector<2x32xf32>
    %127 = vector.extract_strided_slice %124 {offsets = [0, 96], sizes = [2, 32], strides = [1, 1]} : vector<2x128xf32> to vector<2x32xf32>
    %128 = vector.extract_strided_slice %119 {offsets = [0, 64], sizes = [2, 32], strides = [1, 1]} : vector<2x128xf32> to vector<2x32xf32>
    %129 = math.tanh %128 : vector<2x32xf32>
    %130 = arith.mulf %126, %91 : vector<2x32xf32>
    %131 = arith.mulf %125, %129 : vector<2x32xf32>
    %132 = arith.addf %130, %131 : vector<2x32xf32>
    %133 = math.tanh %132 : vector<2x32xf32>
    %134 = arith.mulf %127, %133 : vector<2x32xf32>
    %c0_97 = arith.constant 0 : index
    %c0_98 = arith.constant 0 : index
    %135 = vector.load %arg6[%c0_97, %c0_98] : memref<32x128xf32, #tpu.memory_space<vmem>>, vector<32x128xf32>
    %cst_99 = arith.constant dense<0.000000e+00> : vector<2x128xf32>
    %136 = tpu.matmul %114, %135, %cst_99 {dimension_numbers = #tpu.dot_dimension_numbers<[1], [0], [0], [1], [0, 0, 1, 1], [], []>} : vector<2x32xf32>, vector<32x128xf32>, vector<2x128xf32> -> vector<2x128xf32>
    %c0_100 = arith.constant 0 : index
    %c0_101 = arith.constant 0 : index
    %137 = vector.load %arg5[%c0_100, %c0_101] : memref<32x128xf32, #tpu.memory_space<vmem>>, vector<32x128xf32>
    %cst_102 = arith.constant dense<0.000000e+00> : vector<2x128xf32>
    %138 = tpu.matmul %134, %137, %cst_102 {dimension_numbers = #tpu.dot_dimension_numbers<[1], [0], [0], [1], [0, 0, 1, 1], [], []>} : vector<2x32xf32>, vector<32x128xf32>, vector<2x128xf32> -> vector<2x128xf32>
    %139 = arith.addf %136, %138 : vector<2x128xf32>
    %140 = arith.addf %139, %73 : vector<2x128xf32>
    %141 = arith.negf %140 : vector<2x128xf32>
    %142 = math.exp %141 : vector<2x128xf32>
    %cst_103 = arith.constant 1.000000e+00 : f32
    %143 = vector.broadcast %cst_103 : f32 to vector<2x128xf32>
    %144 = arith.addf %143, %142 : vector<2x128xf32>
    %145 = arith.divf %143, %144 : vector<2x128xf32>
    %146 = vector.extract_strided_slice %145 {offsets = [0, 0], sizes = [2, 32], strides = [1, 1]} : vector<2x128xf32> to vector<2x32xf32>
    %147 = vector.extract_strided_slice %145 {offsets = [0, 32], sizes = [2, 32], strides = [1, 1]} : vector<2x128xf32> to vector<2x32xf32>
    %148 = vector.extract_strided_slice %145 {offsets = [0, 96], sizes = [2, 32], strides = [1, 1]} : vector<2x128xf32> to vector<2x32xf32>
    %149 = vector.extract_strided_slice %140 {offsets = [0, 64], sizes = [2, 32], strides = [1, 1]} : vector<2x128xf32> to vector<2x32xf32>
    %150 = math.tanh %149 : vector<2x32xf32>
    %151 = arith.mulf %147, %112 : vector<2x32xf32>
    %152 = arith.mulf %146, %150 : vector<2x32xf32>
    %153 = arith.addf %151, %152 : vector<2x32xf32>
    %154 = math.tanh %153 : vector<2x32xf32>
    %155 = arith.mulf %148, %154 : vector<2x32xf32>
    %c0_104 = arith.constant 0 : index
    %c32 = arith.constant 32 : index
    %156 = vector.load %arg8[%c0_104, %c32] : memref<2x256xf32, #tpu.memory_space<vmem>>, vector<2x32xf32>
    tpu.vector_store %arg8[%c0_104, %c32], %155 {strides = array<i32>} : memref<2x256xf32, #tpu.memory_space<vmem>>, vector<2x32xf32>,
    %c0_105 = arith.constant 0 : index
    %c0_106 = arith.constant 0 : index
    %157 = vector.load %arg3[%c0_105, %c0_106] : memref<32x128xf32, #tpu.memory_space<vmem>>, vector<32x128xf32>
    %cst_107 = arith.constant dense<0.000000e+00> : vector<2x128xf32>
    %158 = tpu.matmul %134, %157, %cst_107 {dimension_numbers = #tpu.dot_dimension_numbers<[1], [0], [0], [1], [0, 0, 1, 1], [], []>} : vector<2x32xf32>, vector<32x128xf32>, vector<2x128xf32> -> vector<2x128xf32>
    %c0_108 = arith.constant 0 : index
    %c256_109 = arith.constant 256 : index
    %159 = vector.load %arg10[%c0_108, %c256_109] : memref<2x1024xf32, #tpu.memory_space<vmem>>, vector<2x128xf32>
    %160 = arith.addf %158, %159 : vector<2x128xf32>
    %161 = arith.negf %160 : vector<2x128xf32>
    %162 = math.exp %161 : vector<2x128xf32>
    %cst_110 = arith.constant 1.000000e+00 : f32
    %163 = vector.broadcast %cst_110 : f32 to vector<2x128xf32>
    %164 = arith.addf %163, %162 : vector<2x128xf32>
    %165 = arith.divf %163, %164 : vector<2x128xf32>
    %166 = vector.extract_strided_slice %165 {offsets = [0, 0], sizes = [2, 32], strides = [1, 1]} : vector<2x128xf32> to vector<2x32xf32>
    %167 = vector.extract_strided_slice %165 {offsets = [0, 32], sizes = [2, 32], strides = [1, 1]} : vector<2x128xf32> to vector<2x32xf32>
    %168 = vector.extract_strided_slice %165 {offsets = [0, 96], sizes = [2, 32], strides = [1, 1]} : vector<2x128xf32> to vector<2x32xf32>
    %169 = vector.extract_strided_slice %160 {offsets = [0, 64], sizes = [2, 32], strides = [1, 1]} : vector<2x128xf32> to vector<2x32xf32>
    %170 = math.tanh %169 : vector<2x32xf32>
    %171 = arith.mulf %167, %132 : vector<2x32xf32>
    %172 = arith.mulf %166, %170 : vector<2x32xf32>
    %173 = arith.addf %171, %172 : vector<2x32xf32>
    %174 = math.tanh %173 : vector<2x32xf32>
    %175 = arith.mulf %168, %174 : vector<2x32xf32>
    %c0_111 = arith.constant 0 : index
    %c0_112 = arith.constant 0 : index
    %176 = vector.load %arg6[%c0_111, %c0_112] : memref<32x128xf32, #tpu.memory_space<vmem>>, vector<32x128xf32>
    %cst_113 = arith.constant dense<0.000000e+00> : vector<2x128xf32>
    %177 = tpu.matmul %155, %176, %cst_113 {dimension_numbers = #tpu.dot_dimension_numbers<[1], [0], [0], [1], [0, 0, 1, 1], [], []>} : vector<2x32xf32>, vector<32x128xf32>, vector<2x128xf32> -> vector<2x128xf32>
    %c0_114 = arith.constant 0 : index
    %c0_115 = arith.constant 0 : index
    %178 = vector.load %arg5[%c0_114, %c0_115] : memref<32x128xf32, #tpu.memory_space<vmem>>, vector<32x128xf32>
    %cst_116 = arith.constant dense<0.000000e+00> : vector<2x128xf32>
    %179 = tpu.matmul %175, %178, %cst_116 {dimension_numbers = #tpu.dot_dimension_numbers<[1], [0], [0], [1], [0, 0, 1, 1], [], []>} : vector<2x32xf32>, vector<32x128xf32>, vector<2x128xf32> -> vector<2x128xf32>
    %180 = arith.addf %177, %179 : vector<2x128xf32>
    %181 = arith.addf %180, %73 : vector<2x128xf32>
    %182 = arith.negf %181 : vector<2x128xf32>
    %183 = math.exp %182 : vector<2x128xf32>
    %cst_117 = arith.constant 1.000000e+00 : f32
    %184 = vector.broadcast %cst_117 : f32 to vector<2x128xf32>
    %185 = arith.addf %184, %183 : vector<2x128xf32>
    %186 = arith.divf %184, %185 : vector<2x128xf32>
    %187 = vector.extract_strided_slice %186 {offsets = [0, 0], sizes = [2, 32], strides = [1, 1]} : vector<2x128xf32> to vector<2x32xf32>
    %188 = vector.extract_strided_slice %186 {offsets = [0, 32], sizes = [2, 32], strides = [1, 1]} : vector<2x128xf32> to vector<2x32xf32>
    %189 = vector.extract_strided_slice %186 {offsets = [0, 96], sizes = [2, 32], strides = [1, 1]} : vector<2x128xf32> to vector<2x32xf32>
    %190 = vector.extract_strided_slice %181 {offsets = [0, 64], sizes = [2, 32], strides = [1, 1]} : vector<2x128xf32> to vector<2x32xf32>
    %191 = math.tanh %190 : vector<2x32xf32>
    %192 = arith.mulf %188, %153 : vector<2x32xf32>
    %193 = arith.mulf %187, %191 : vector<2x32xf32>
    %194 = arith.addf %192, %193 : vector<2x32xf32>
    %195 = math.tanh %194 : vector<2x32xf32>
    %196 = arith.mulf %189, %195 : vector<2x32xf32>
    %c0_118 = arith.constant 0 : index
    %c64 = arith.constant 64 : index
    %197 = vector.load %arg8[%c0_118, %c64] : memref<2x256xf32, #tpu.memory_space<vmem>>, vector<2x32xf32>
    tpu.vector_store %arg8[%c0_118, %c64], %196 {strides = array<i32>} : memref<2x256xf32, #tpu.memory_space<vmem>>, vector<2x32xf32>,
    %c0_119 = arith.constant 0 : index
    %c0_120 = arith.constant 0 : index
    %198 = vector.load %arg3[%c0_119, %c0_120] : memref<32x128xf32, #tpu.memory_space<vmem>>, vector<32x128xf32>
    %cst_121 = arith.constant dense<0.000000e+00> : vector<2x128xf32>
    %199 = tpu.matmul %175, %198, %cst_121 {dimension_numbers = #tpu.dot_dimension_numbers<[1], [0], [0], [1], [0, 0, 1, 1], [], []>} : vector<2x32xf32>, vector<32x128xf32>, vector<2x128xf32> -> vector<2x128xf32>
    %c0_122 = arith.constant 0 : index
    %c384_123 = arith.constant 384 : index
    %200 = vector.load %arg10[%c0_122, %c384_123] : memref<2x1024xf32, #tpu.memory_space<vmem>>, vector<2x128xf32>
    %201 = arith.addf %199, %200 : vector<2x128xf32>
    %202 = arith.negf %201 : vector<2x128xf32>
    %203 = math.exp %202 : vector<2x128xf32>
    %cst_124 = arith.constant 1.000000e+00 : f32
    %204 = vector.broadcast %cst_124 : f32 to vector<2x128xf32>
    %205 = arith.addf %204, %203 : vector<2x128xf32>
    %206 = arith.divf %204, %205 : vector<2x128xf32>
    %207 = vector.extract_strided_slice %206 {offsets = [0, 0], sizes = [2, 32], strides = [1, 1]} : vector<2x128xf32> to vector<2x32xf32>
    %208 = vector.extract_strided_slice %206 {offsets = [0, 32], sizes = [2, 32], strides = [1, 1]} : vector<2x128xf32> to vector<2x32xf32>
    %209 = vector.extract_strided_slice %206 {offsets = [0, 96], sizes = [2, 32], strides = [1, 1]} : vector<2x128xf32> to vector<2x32xf32>
    %210 = vector.extract_strided_slice %201 {offsets = [0, 64], sizes = [2, 32], strides = [1, 1]} : vector<2x128xf32> to vector<2x32xf32>
    %211 = math.tanh %210 : vector<2x32xf32>
    %212 = arith.mulf %208, %173 : vector<2x32xf32>
    %213 = arith.mulf %207, %211 : vector<2x32xf32>
    %214 = arith.addf %212, %213 : vector<2x32xf32>
    %215 = math.tanh %214 : vector<2x32xf32>
    %216 = arith.mulf %209, %215 : vector<2x32xf32>
    %c0_125 = arith.constant 0 : index
    %c0_126 = arith.constant 0 : index
    %217 = vector.load %arg6[%c0_125, %c0_126] : memref<32x128xf32, #tpu.memory_space<vmem>>, vector<32x128xf32>
    %cst_127 = arith.constant dense<0.000000e+00> : vector<2x128xf32>
    %218 = tpu.matmul %196, %217, %cst_127 {dimension_numbers = #tpu.dot_dimension_numbers<[1], [0], [0], [1], [0, 0, 1, 1], [], []>} : vector<2x32xf32>, vector<32x128xf32>, vector<2x128xf32> -> vector<2x128xf32>
    %c0_128 = arith.constant 0 : index
    %c0_129 = arith.constant 0 : index
    %219 = vector.load %arg5[%c0_128, %c0_129] : memref<32x128xf32, #tpu.memory_space<vmem>>, vector<32x128xf32>
    %cst_130 = arith.constant dense<0.000000e+00> : vector<2x128xf32>
    %220 = tpu.matmul %216, %219, %cst_130 {dimension_numbers = #tpu.dot_dimension_numbers<[1], [0], [0], [1], [0, 0, 1, 1], [], []>} : vector<2x32xf32>, vector<32x128xf32>, vector<2x128xf32> -> vector<2x128xf32>
    %221 = arith.addf %218, %220 : vector<2x128xf32>
    %222 = arith.addf %221, %73 : vector<2x128xf32>
    %223 = arith.negf %222 : vector<2x128xf32>
    %224 = math.exp %223 : vector<2x128xf32>
    %cst_131 = arith.constant 1.000000e+00 : f32
    %225 = vector.broadcast %cst_131 : f32 to vector<2x128xf32>
    %226 = arith.addf %225, %224 : vector<2x128xf32>
    %227 = arith.divf %225, %226 : vector<2x128xf32>
    %228 = vector.extract_strided_slice %227 {offsets = [0, 0], sizes = [2, 32], strides = [1, 1]} : vector<2x128xf32> to vector<2x32xf32>
    %229 = vector.extract_strided_slice %227 {offsets = [0, 32], sizes = [2, 32], strides = [1, 1]} : vector<2x128xf32> to vector<2x32xf32>
    %230 = vector.extract_strided_slice %227 {offsets = [0, 96], sizes = [2, 32], strides = [1, 1]} : vector<2x128xf32> to vector<2x32xf32>
    %231 = vector.extract_strided_slice %222 {offsets = [0, 64], sizes = [2, 32], strides = [1, 1]} : vector<2x128xf32> to vector<2x32xf32>
    %232 = math.tanh %231 : vector<2x32xf32>
    %233 = arith.mulf %229, %194 : vector<2x32xf32>
    %234 = arith.mulf %228, %232 : vector<2x32xf32>
    %235 = arith.addf %233, %234 : vector<2x32xf32>
    %236 = math.tanh %235 : vector<2x32xf32>
    %237 = arith.mulf %230, %236 : vector<2x32xf32>
    %c0_132 = arith.constant 0 : index
    %c96 = arith.constant 96 : index
    %238 = vector.load %arg8[%c0_132, %c96] : memref<2x256xf32, #tpu.memory_space<vmem>>, vector<2x32xf32>
    tpu.vector_store %arg8[%c0_132, %c96], %237 {strides = array<i32>} : memref<2x256xf32, #tpu.memory_space<vmem>>, vector<2x32xf32>,
    %c0_133 = arith.constant 0 : index
    %c0_134 = arith.constant 0 : index
    %239 = vector.load %arg3[%c0_133, %c0_134] : memref<32x128xf32, #tpu.memory_space<vmem>>, vector<32x128xf32>
    %cst_135 = arith.constant dense<0.000000e+00> : vector<2x128xf32>
    %240 = tpu.matmul %216, %239, %cst_135 {dimension_numbers = #tpu.dot_dimension_numbers<[1], [0], [0], [1], [0, 0, 1, 1], [], []>} : vector<2x32xf32>, vector<32x128xf32>, vector<2x128xf32> -> vector<2x128xf32>
    %c0_136 = arith.constant 0 : index
    %c512_137 = arith.constant 512 : index
    %241 = vector.load %arg10[%c0_136, %c512_137] : memref<2x1024xf32, #tpu.memory_space<vmem>>, vector<2x128xf32>
    %242 = arith.addf %240, %241 : vector<2x128xf32>
    %243 = arith.negf %242 : vector<2x128xf32>
    %244 = math.exp %243 : vector<2x128xf32>
    %cst_138 = arith.constant 1.000000e+00 : f32
    %245 = vector.broadcast %cst_138 : f32 to vector<2x128xf32>
    %246 = arith.addf %245, %244 : vector<2x128xf32>
    %247 = arith.divf %245, %246 : vector<2x128xf32>
    %248 = vector.extract_strided_slice %247 {offsets = [0, 0], sizes = [2, 32], strides = [1, 1]} : vector<2x128xf32> to vector<2x32xf32>
    %249 = vector.extract_strided_slice %247 {offsets = [0, 32], sizes = [2, 32], strides = [1, 1]} : vector<2x128xf32> to vector<2x32xf32>
    %250 = vector.extract_strided_slice %247 {offsets = [0, 96], sizes = [2, 32], strides = [1, 1]} : vector<2x128xf32> to vector<2x32xf32>
    %251 = vector.extract_strided_slice %242 {offsets = [0, 64], sizes = [2, 32], strides = [1, 1]} : vector<2x128xf32> to vector<2x32xf32>
    %252 = math.tanh %251 : vector<2x32xf32>
    %253 = arith.mulf %249, %214 : vector<2x32xf32>
    %254 = arith.mulf %248, %252 : vector<2x32xf32>
    %255 = arith.addf %253, %254 : vector<2x32xf32>
    %256 = math.tanh %255 : vector<2x32xf32>
    %257 = arith.mulf %250, %256 : vector<2x32xf32>
    %c0_139 = arith.constant 0 : index
    %c0_140 = arith.constant 0 : index
    %258 = vector.load %arg6[%c0_139, %c0_140] : memref<32x128xf32, #tpu.memory_space<vmem>>, vector<32x128xf32>
    %cst_141 = arith.constant dense<0.000000e+00> : vector<2x128xf32>
    %259 = tpu.matmul %237, %258, %cst_141 {dimension_numbers = #tpu.dot_dimension_numbers<[1], [0], [0], [1], [0, 0, 1, 1], [], []>} : vector<2x32xf32>, vector<32x128xf32>, vector<2x128xf32> -> vector<2x128xf32>
    %c0_142 = arith.constant 0 : index
    %c0_143 = arith.constant 0 : index
    %260 = vector.load %arg5[%c0_142, %c0_143] : memref<32x128xf32, #tpu.memory_space<vmem>>, vector<32x128xf32>
    %cst_144 = arith.constant dense<0.000000e+00> : vector<2x128xf32>
    %261 = tpu.matmul %257, %260, %cst_144 {dimension_numbers = #tpu.dot_dimension_numbers<[1], [0], [0], [1], [0, 0, 1, 1], [], []>} : vector<2x32xf32>, vector<32x128xf32>, vector<2x128xf32> -> vector<2x128xf32>
    %262 = arith.addf %259, %261 : vector<2x128xf32>
    %263 = arith.addf %262, %73 : vector<2x128xf32>
    %264 = arith.negf %263 : vector<2x128xf32>
    %265 = math.exp %264 : vector<2x128xf32>
    %cst_145 = arith.constant 1.000000e+00 : f32
    %266 = vector.broadcast %cst_145 : f32 to vector<2x128xf32>
    %267 = arith.addf %266, %265 : vector<2x128xf32>
    %268 = arith.divf %266, %267 : vector<2x128xf32>
    %269 = vector.extract_strided_slice %268 {offsets = [0, 0], sizes = [2, 32], strides = [1, 1]} : vector<2x128xf32> to vector<2x32xf32>
    %270 = vector.extract_strided_slice %268 {offsets = [0, 32], sizes = [2, 32], strides = [1, 1]} : vector<2x128xf32> to vector<2x32xf32>
    %271 = vector.extract_strided_slice %268 {offsets = [0, 96], sizes = [2, 32], strides = [1, 1]} : vector<2x128xf32> to vector<2x32xf32>
    %272 = vector.extract_strided_slice %263 {offsets = [0, 64], sizes = [2, 32], strides = [1, 1]} : vector<2x128xf32> to vector<2x32xf32>
    %273 = math.tanh %272 : vector<2x32xf32>
    %274 = arith.mulf %270, %235 : vector<2x32xf32>
    %275 = arith.mulf %269, %273 : vector<2x32xf32>
    %276 = arith.addf %274, %275 : vector<2x32xf32>
    %277 = math.tanh %276 : vector<2x32xf32>
    %278 = arith.mulf %271, %277 : vector<2x32xf32>
    %c0_146 = arith.constant 0 : index
    %c128_147 = arith.constant 128 : index
    %279 = vector.load %arg8[%c0_146, %c128_147] : memref<2x256xf32, #tpu.memory_space<vmem>>, vector<2x32xf32>
    tpu.vector_store %arg8[%c0_146, %c128_147], %278 {strides = array<i32>} : memref<2x256xf32, #tpu.memory_space<vmem>>, vector<2x32xf32>,
    %c0_148 = arith.constant 0 : index
    %c0_149 = arith.constant 0 : index
    %280 = vector.load %arg3[%c0_148, %c0_149] : memref<32x128xf32, #tpu.memory_space<vmem>>, vector<32x128xf32>
    %cst_150 = arith.constant dense<0.000000e+00> : vector<2x128xf32>
    %281 = tpu.matmul %257, %280, %cst_150 {dimension_numbers = #tpu.dot_dimension_numbers<[1], [0], [0], [1], [0, 0, 1, 1], [], []>} : vector<2x32xf32>, vector<32x128xf32>, vector<2x128xf32> -> vector<2x128xf32>
    %c0_151 = arith.constant 0 : index
    %c640_152 = arith.constant 640 : index
    %282 = vector.load %arg10[%c0_151, %c640_152] : memref<2x1024xf32, #tpu.memory_space<vmem>>, vector<2x128xf32>
    %283 = arith.addf %281, %282 : vector<2x128xf32>
    %284 = arith.negf %283 : vector<2x128xf32>
    %285 = math.exp %284 : vector<2x128xf32>
    %cst_153 = arith.constant 1.000000e+00 : f32
    %286 = vector.broadcast %cst_153 : f32 to vector<2x128xf32>
    %287 = arith.addf %286, %285 : vector<2x128xf32>
    %288 = arith.divf %286, %287 : vector<2x128xf32>
    %289 = vector.extract_strided_slice %288 {offsets = [0, 0], sizes = [2, 32], strides = [1, 1]} : vector<2x128xf32> to vector<2x32xf32>
    %290 = vector.extract_strided_slice %288 {offsets = [0, 32], sizes = [2, 32], strides = [1, 1]} : vector<2x128xf32> to vector<2x32xf32>
    %291 = vector.extract_strided_slice %288 {offsets = [0, 96], sizes = [2, 32], strides = [1, 1]} : vector<2x128xf32> to vector<2x32xf32>
    %292 = vector.extract_strided_slice %283 {offsets = [0, 64], sizes = [2, 32], strides = [1, 1]} : vector<2x128xf32> to vector<2x32xf32>
    %293 = math.tanh %292 : vector<2x32xf32>
    %294 = arith.mulf %290, %255 : vector<2x32xf32>
    %295 = arith.mulf %289, %293 : vector<2x32xf32>
    %296 = arith.addf %294, %295 : vector<2x32xf32>
    %297 = math.tanh %296 : vector<2x32xf32>
    %298 = arith.mulf %291, %297 : vector<2x32xf32>
    %c0_154 = arith.constant 0 : index
    %c0_155 = arith.constant 0 : index
    %299 = vector.load %arg6[%c0_154, %c0_155] : memref<32x128xf32, #tpu.memory_space<vmem>>, vector<32x128xf32>
    %cst_156 = arith.constant dense<0.000000e+00> : vector<2x128xf32>
    %300 = tpu.matmul %278, %299, %cst_156 {dimension_numbers = #tpu.dot_dimension_numbers<[1], [0], [0], [1], [0, 0, 1, 1], [], []>} : vector<2x32xf32>, vector<32x128xf32>, vector<2x128xf32> -> vector<2x128xf32>
    %c0_157 = arith.constant 0 : index
    %c0_158 = arith.constant 0 : index
    %301 = vector.load %arg5[%c0_157, %c0_158] : memref<32x128xf32, #tpu.memory_space<vmem>>, vector<32x128xf32>
    %cst_159 = arith.constant dense<0.000000e+00> : vector<2x128xf32>
    %302 = tpu.matmul %298, %301, %cst_159 {dimension_numbers = #tpu.dot_dimension_numbers<[1], [0], [0], [1], [0, 0, 1, 1], [], []>} : vector<2x32xf32>, vector<32x128xf32>, vector<2x128xf32> -> vector<2x128xf32>
    %303 = arith.addf %300, %302 : vector<2x128xf32>
    %304 = arith.addf %303, %73 : vector<2x128xf32>
    %305 = arith.negf %304 : vector<2x128xf32>
    %306 = math.exp %305 : vector<2x128xf32>
    %cst_160 = arith.constant 1.000000e+00 : f32
    %307 = vector.broadcast %cst_160 : f32 to vector<2x128xf32>
    %308 = arith.addf %307, %306 : vector<2x128xf32>
    %309 = arith.divf %307, %308 : vector<2x128xf32>
    %310 = vector.extract_strided_slice %309 {offsets = [0, 0], sizes = [2, 32], strides = [1, 1]} : vector<2x128xf32> to vector<2x32xf32>
    %311 = vector.extract_strided_slice %309 {offsets = [0, 32], sizes = [2, 32], strides = [1, 1]} : vector<2x128xf32> to vector<2x32xf32>
    %312 = vector.extract_strided_slice %309 {offsets = [0, 96], sizes = [2, 32], strides = [1, 1]} : vector<2x128xf32> to vector<2x32xf32>
    %313 = vector.extract_strided_slice %304 {offsets = [0, 64], sizes = [2, 32], strides = [1, 1]} : vector<2x128xf32> to vector<2x32xf32>
    %314 = math.tanh %313 : vector<2x32xf32>
    %315 = arith.mulf %311, %276 : vector<2x32xf32>
    %316 = arith.mulf %310, %314 : vector<2x32xf32>
    %317 = arith.addf %315, %316 : vector<2x32xf32>
    %318 = math.tanh %317 : vector<2x32xf32>
    %319 = arith.mulf %312, %318 : vector<2x32xf32>
    %c0_161 = arith.constant 0 : index
    %c160 = arith.constant 160 : index
    %320 = vector.load %arg8[%c0_161, %c160] : memref<2x256xf32, #tpu.memory_space<vmem>>, vector<2x32xf32>
    tpu.vector_store %arg8[%c0_161, %c160], %319 {strides = array<i32>} : memref<2x256xf32, #tpu.memory_space<vmem>>, vector<2x32xf32>,
    %c0_162 = arith.constant 0 : index
    %c0_163 = arith.constant 0 : index
    %321 = vector.load %arg3[%c0_162, %c0_163] : memref<32x128xf32, #tpu.memory_space<vmem>>, vector<32x128xf32>
    %cst_164 = arith.constant dense<0.000000e+00> : vector<2x128xf32>
    %322 = tpu.matmul %298, %321, %cst_164 {dimension_numbers = #tpu.dot_dimension_numbers<[1], [0], [0], [1], [0, 0, 1, 1], [], []>} : vector<2x32xf32>, vector<32x128xf32>, vector<2x128xf32> -> vector<2x128xf32>
    %c0_165 = arith.constant 0 : index
    %c768_166 = arith.constant 768 : index
    %323 = vector.load %arg10[%c0_165, %c768_166] : memref<2x1024xf32, #tpu.memory_space<vmem>>, vector<2x128xf32>
    %324 = arith.addf %322, %323 : vector<2x128xf32>
    %325 = arith.negf %324 : vector<2x128xf32>
    %326 = math.exp %325 : vector<2x128xf32>
    %cst_167 = arith.constant 1.000000e+00 : f32
    %327 = vector.broadcast %cst_167 : f32 to vector<2x128xf32>
    %328 = arith.addf %327, %326 : vector<2x128xf32>
    %329 = arith.divf %327, %328 : vector<2x128xf32>
    %330 = vector.extract_strided_slice %329 {offsets = [0, 0], sizes = [2, 32], strides = [1, 1]} : vector<2x128xf32> to vector<2x32xf32>
    %331 = vector.extract_strided_slice %329 {offsets = [0, 32], sizes = [2, 32], strides = [1, 1]} : vector<2x128xf32> to vector<2x32xf32>
    %332 = vector.extract_strided_slice %329 {offsets = [0, 96], sizes = [2, 32], strides = [1, 1]} : vector<2x128xf32> to vector<2x32xf32>
    %333 = vector.extract_strided_slice %324 {offsets = [0, 64], sizes = [2, 32], strides = [1, 1]} : vector<2x128xf32> to vector<2x32xf32>
    %334 = math.tanh %333 : vector<2x32xf32>
    %335 = arith.mulf %331, %296 : vector<2x32xf32>
    %336 = arith.mulf %330, %334 : vector<2x32xf32>
    %337 = arith.addf %335, %336 : vector<2x32xf32>
    %338 = math.tanh %337 : vector<2x32xf32>
    %339 = arith.mulf %332, %338 : vector<2x32xf32>
    %c0_168 = arith.constant 0 : index
    %c0_169 = arith.constant 0 : index
    %340 = vector.load %arg6[%c0_168, %c0_169] : memref<32x128xf32, #tpu.memory_space<vmem>>, vector<32x128xf32>
    %cst_170 = arith.constant dense<0.000000e+00> : vector<2x128xf32>
    %341 = tpu.matmul %319, %340, %cst_170 {dimension_numbers = #tpu.dot_dimension_numbers<[1], [0], [0], [1], [0, 0, 1, 1], [], []>} : vector<2x32xf32>, vector<32x128xf32>, vector<2x128xf32> -> vector<2x128xf32>
    %c0_171 = arith.constant 0 : index
    %c0_172 = arith.constant 0 : index
    %342 = vector.load %arg5[%c0_171, %c0_172] : memref<32x128xf32, #tpu.memory_space<vmem>>, vector<32x128xf32>
    %cst_173 = arith.constant dense<0.000000e+00> : vector<2x128xf32>
    %343 = tpu.matmul %339, %342, %cst_173 {dimension_numbers = #tpu.dot_dimension_numbers<[1], [0], [0], [1], [0, 0, 1, 1], [], []>} : vector<2x32xf32>, vector<32x128xf32>, vector<2x128xf32> -> vector<2x128xf32>
    %344 = arith.addf %341, %343 : vector<2x128xf32>
    %345 = arith.addf %344, %73 : vector<2x128xf32>
    %346 = arith.negf %345 : vector<2x128xf32>
    %347 = math.exp %346 : vector<2x128xf32>
    %cst_174 = arith.constant 1.000000e+00 : f32
    %348 = vector.broadcast %cst_174 : f32 to vector<2x128xf32>
    %349 = arith.addf %348, %347 : vector<2x128xf32>
    %350 = arith.divf %348, %349 : vector<2x128xf32>
    %351 = vector.extract_strided_slice %350 {offsets = [0, 0], sizes = [2, 32], strides = [1, 1]} : vector<2x128xf32> to vector<2x32xf32>
    %352 = vector.extract_strided_slice %350 {offsets = [0, 32], sizes = [2, 32], strides = [1, 1]} : vector<2x128xf32> to vector<2x32xf32>
    %353 = vector.extract_strided_slice %350 {offsets = [0, 96], sizes = [2, 32], strides = [1, 1]} : vector<2x128xf32> to vector<2x32xf32>
    %354 = vector.extract_strided_slice %345 {offsets = [0, 64], sizes = [2, 32], strides = [1, 1]} : vector<2x128xf32> to vector<2x32xf32>
    %355 = math.tanh %354 : vector<2x32xf32>
    %356 = arith.mulf %352, %317 : vector<2x32xf32>
    %357 = arith.mulf %351, %355 : vector<2x32xf32>
    %358 = arith.addf %356, %357 : vector<2x32xf32>
    %359 = math.tanh %358 : vector<2x32xf32>
    %360 = arith.mulf %353, %359 : vector<2x32xf32>
    %c0_175 = arith.constant 0 : index
    %c192 = arith.constant 192 : index
    %361 = vector.load %arg8[%c0_175, %c192] : memref<2x256xf32, #tpu.memory_space<vmem>>, vector<2x32xf32>
    tpu.vector_store %arg8[%c0_175, %c192], %360 {strides = array<i32>} : memref<2x256xf32, #tpu.memory_space<vmem>>, vector<2x32xf32>,
    %c0_176 = arith.constant 0 : index
    %c0_177 = arith.constant 0 : index
    %362 = vector.load %arg3[%c0_176, %c0_177] : memref<32x128xf32, #tpu.memory_space<vmem>>, vector<32x128xf32>
    %cst_178 = arith.constant dense<0.000000e+00> : vector<2x128xf32>
    %363 = tpu.matmul %339, %362, %cst_178 {dimension_numbers = #tpu.dot_dimension_numbers<[1], [0], [0], [1], [0, 0, 1, 1], [], []>} : vector<2x32xf32>, vector<32x128xf32>, vector<2x128xf32> -> vector<2x128xf32>
    %c0_179 = arith.constant 0 : index
    %c896_180 = arith.constant 896 : index
    %364 = vector.load %arg10[%c0_179, %c896_180] : memref<2x1024xf32, #tpu.memory_space<vmem>>, vector<2x128xf32>
    %365 = arith.addf %363, %364 : vector<2x128xf32>
    %366 = arith.negf %365 : vector<2x128xf32>
    %367 = math.exp %366 : vector<2x128xf32>
    %cst_181 = arith.constant 1.000000e+00 : f32
    %368 = vector.broadcast %cst_181 : f32 to vector<2x128xf32>
    %369 = arith.addf %368, %367 : vector<2x128xf32>
    %370 = arith.divf %368, %369 : vector<2x128xf32>
    %371 = vector.extract_strided_slice %370 {offsets = [0, 0], sizes = [2, 32], strides = [1, 1]} : vector<2x128xf32> to vector<2x32xf32>
    %372 = vector.extract_strided_slice %370 {offsets = [0, 32], sizes = [2, 32], strides = [1, 1]} : vector<2x128xf32> to vector<2x32xf32>
    %373 = vector.extract_strided_slice %370 {offsets = [0, 96], sizes = [2, 32], strides = [1, 1]} : vector<2x128xf32> to vector<2x32xf32>
    %374 = vector.extract_strided_slice %365 {offsets = [0, 64], sizes = [2, 32], strides = [1, 1]} : vector<2x128xf32> to vector<2x32xf32>
    %375 = math.tanh %374 : vector<2x32xf32>
    %376 = arith.mulf %372, %337 : vector<2x32xf32>
    %377 = arith.mulf %371, %375 : vector<2x32xf32>
    %378 = arith.addf %376, %377 : vector<2x32xf32>
    %379 = math.tanh %378 : vector<2x32xf32>
    %380 = arith.mulf %373, %379 : vector<2x32xf32>
    %c0_182 = arith.constant 0 : index
    %c0_183 = arith.constant 0 : index
    %381 = vector.load %arg6[%c0_182, %c0_183] : memref<32x128xf32, #tpu.memory_space<vmem>>, vector<32x128xf32>
    %cst_184 = arith.constant dense<0.000000e+00> : vector<2x128xf32>
    %382 = tpu.matmul %360, %381, %cst_184 {dimension_numbers = #tpu.dot_dimension_numbers<[1], [0], [0], [1], [0, 0, 1, 1], [], []>} : vector<2x32xf32>, vector<32x128xf32>, vector<2x128xf32> -> vector<2x128xf32>
    %c0_185 = arith.constant 0 : index
    %c0_186 = arith.constant 0 : index
    %383 = vector.load %arg5[%c0_185, %c0_186] : memref<32x128xf32, #tpu.memory_space<vmem>>, vector<32x128xf32>
    %cst_187 = arith.constant dense<0.000000e+00> : vector<2x128xf32>
    %384 = tpu.matmul %380, %383, %cst_187 {dimension_numbers = #tpu.dot_dimension_numbers<[1], [0], [0], [1], [0, 0, 1, 1], [], []>} : vector<2x32xf32>, vector<32x128xf32>, vector<2x128xf32> -> vector<2x128xf32>
    %385 = arith.addf %382, %384 : vector<2x128xf32>
    %386 = arith.addf %385, %73 : vector<2x128xf32>
    %387 = arith.negf %386 : vector<2x128xf32>
    %388 = math.exp %387 : vector<2x128xf32>
    %cst_188 = arith.constant 1.000000e+00 : f32
    %389 = vector.broadcast %cst_188 : f32 to vector<2x128xf32>
    %390 = arith.addf %389, %388 : vector<2x128xf32>
    %391 = arith.divf %389, %390 : vector<2x128xf32>
    %392 = vector.extract_strided_slice %391 {offsets = [0, 0], sizes = [2, 32], strides = [1, 1]} : vector<2x128xf32> to vector<2x32xf32>
    %393 = vector.extract_strided_slice %391 {offsets = [0, 32], sizes = [2, 32], strides = [1, 1]} : vector<2x128xf32> to vector<2x32xf32>
    %394 = vector.extract_strided_slice %391 {offsets = [0, 96], sizes = [2, 32], strides = [1, 1]} : vector<2x128xf32> to vector<2x32xf32>
    %395 = vector.extract_strided_slice %386 {offsets = [0, 64], sizes = [2, 32], strides = [1, 1]} : vector<2x128xf32> to vector<2x32xf32>
    %396 = math.tanh %395 : vector<2x32xf32>
    %397 = arith.mulf %393, %358 : vector<2x32xf32>
    %398 = arith.mulf %392, %396 : vector<2x32xf32>
    %399 = arith.addf %397, %398 : vector<2x32xf32>
    %400 = math.tanh %399 : vector<2x32xf32>
    %401 = arith.mulf %394, %400 : vector<2x32xf32>
    %c0_189 = arith.constant 0 : index
    %c224 = arith.constant 224 : index
    %402 = vector.load %arg8[%c0_189, %c224] : memref<2x256xf32, #tpu.memory_space<vmem>>, vector<2x32xf32>
    tpu.vector_store %arg8[%c0_189, %c224], %401 {strides = array<i32>} : memref<2x256xf32, #tpu.memory_space<vmem>>, vector<2x32xf32>,
    return
  }
}

</mosaic_0001>

<llo_original>
// kernel: tpu_custom_call.1
$region0: #{tpu_custom_call.1}
  #allocation0 [shape = 'u32[]', space=smem, size = 0x4, offset = 0x4, fixed_abs, tag = 'smem constant byte address 0x4 - core index']
  #allocation1 [shape = 'u32[72,128]{1,0:T(1,128)}', space=vmem, size = 0x9000, scoped, tag = 'internal scratch']
  #allocation2 [shape = 'f32[16,128]{1,0:T(8,128)}', space=vmem, size = 0x2000, scoped, tag = 'scratch operand']
  #allocation3 [shape = 'f32[2,1024]{1,0:T(2,128)}', space=vmem, size = 0x2000, scoped, tag = 'scratch operand']
  %s0 = inlined_call_operand.hbm [shape: s32[2,8], index: 0, kind: input, shape index: {}]
  %s1 = inlined_call_operand.hbm [shape: f32[16,32], index: 1, kind: input, shape index: {}]
  %s2 = inlined_call_operand.hbm [shape: f32[32,128], index: 2, kind: input, shape index: {}]
  %s3 = inlined_call_operand.hbm [shape: f32[32,128], index: 3, kind: input, shape index: {}]
  %s4 = inlined_call_operand.vmem [shape: f32[1,128], index: 4, kind: input, shape index: {}]
  %s5 = inlined_call_operand.hbm [shape: f32[32,128], index: 5, kind: input, shape index: {}]
  %s6 = inlined_call_operand.hbm [shape: f32[32,128], index: 6, kind: input, shape index: {}]
  %s7 = inlined_call_operand.vmem [shape: f32[1,128], index: 7, kind: input, shape index: {}]
  %s8 = inlined_call_operand.hbm [shape: f32[2,256], index: 8, kind: output, shape index: {}]
  %s9 = sld [smem:[#allocation0]]
  $region66: #{tpu_custom_call.1} parent=0
    _
  %s11 = ssub.s32 1, %s9
  %s12 = scalar_select 0, %s11, %s9
  $region1: #{tpu_custom_call.1} parent=0
    #allocation4 [shape = 'u8[1024]{0}', space=smem, size = 0x400, scoped, tag = 'input window, operand 0, single buffered']
    #allocation5 [shape = 's32[1]{0}', space=sflag, size = 0x4, scoped, tag = 'scoped memory for tpu_custom_call.1']
    #allocation6 [shape = 's32[1]{0}', space=sflag, size = 0x4, scoped, tag = 'scoped memory for tpu_custom_call.1']
    #allocation7 [shape = 's32[1]{0}', space=sflag, size = 0x4, scoped, tag = 'scoped memory for tpu_custom_call.1']
    #allocation8 [shape = 'u8[8192]{0}', space=vmem, size = 0x2000, scoped, tag = 'input window, operand 1, single buffered']
    #allocation9 [shape = 'u8[16384]{0}', space=vmem, size = 0x4000, scoped, tag = 'input window, operand 2, single buffered']
    #allocation10 [shape = 's32[1]{0}', space=sflag, size = 0x4, scoped, tag = 'scoped memory for tpu_custom_call.1']
    #allocation11 [shape = 'u8[16384]{0}', space=vmem, size = 0x4000, scoped, tag = 'input window, operand 3, single buffered']
    #allocation12 [shape = 'u8[16384]{0}', space=vmem, size = 0x4000, scoped, tag = 'input window, operand 5, single buffered']
    #allocation13 [shape = 's32[1]{0}', space=sflag, size = 0x4, scoped, tag = 'scoped memory for tpu_custom_call.1']
    #allocation14 [shape = 'u8[16384]{0}', space=vmem, size = 0x4000, scoped, tag = 'input window, operand 6, single buffered']
    #allocation15 [shape = 'u8[2048]{0}', space=vmem, size = 0x800, scoped, tag = 'output window, operand 0, single buffered']
    %13 = vsyncpa [#allocation7], 0
    %14 = vsyncpa [#allocation5], 0
    %15 = vsyncpa [#allocation10], 0
    %16 = vsyncpa [#allocation13], 0
    %17 = vsyncpa [#allocation6], 0
    // Predicated region
    $region2: #{tpu_custom_call.1} parent=1 // pred_check
      _
    $region3: #{tpu_custom_call.1} parent=1 // pred_check_branch
      %19 = sbr.rel (0) target = $region5
    $region4: #{tpu_custom_call.1} parent=1 // pred_region
      %21 = vsyncadd [#allocation7], 0
      %s23 = sshll.u32 %s0, 4
      %s24 = int_to_ptr.hbm [resolvable:$true] %s23
      %26 = dma.hbm_to_smem %s24, 32, [#allocation4], [#allocation7]
    $region5: #{tpu_custom_call.1} parent=1 // pred_fallthru
      _
    // Predicated region
    $region6: #{tpu_custom_call.1} parent=1 // pred_check
      _
    $region7: #{tpu_custom_call.1} parent=1 // pred_check_branch
      %28 = sbr.rel (0) target = $region9
    $region8: #{tpu_custom_call.1} parent=1 // pred_region
      %30 = vsyncadd [#allocation5], 0
      %s31 = sshll.u32 %s1, 4
      %s32 = int_to_ptr.hbm [resolvable:$true] %s31
      %s33 = sshll.u32 [#allocation8], 4
      %s34 = int_to_ptr.vmem [resolvable:$true] %s33
      %39 = dma.hbm_to_vmem [thread:$0]  %s32, 256, %s34, [#allocation5], 128, 128, 8
    $region9: #{tpu_custom_call.1} parent=1 // pred_fallthru
      _
    // Predicated region
    $region10: #{tpu_custom_call.1} parent=1 // pred_check
      _
    $region11: #{tpu_custom_call.1} parent=1 // pred_check_branch
      %41 = sbr.rel (0) target = $region13
    $region12: #{tpu_custom_call.1} parent=1 // pred_region
      %43 = vsyncadd [#allocation10], 0
      %s44 = sshll.u32 %s2, 4
      %s45 = int_to_ptr.hbm [resolvable:$true] %s44
      %s46 = sshll.u32 [#allocation9], 4
      %s47 = int_to_ptr.vmem [resolvable:$true] %s46
      %52 = dma.hbm_to_vmem [thread:$0]  %s45, 512, %s47, [#allocation10], 128, 128, 8
    $region13: #{tpu_custom_call.1} parent=1 // pred_fallthru
      _
    // Predicated region
    $region14: #{tpu_custom_call.1} parent=1 // pred_check
      _
    $region15: #{tpu_custom_call.1} parent=1 // pred_check_branch
      %54 = sbr.rel (0) target = $region17
    $region16: #{tpu_custom_call.1} parent=1 // pred_region
      %56 = vsyncadd [#allocation10], 0
      %s57 = sshll.u32 %s3, 4
      %s58 = int_to_ptr.hbm [resolvable:$true] %s57
      %s59 = sshll.u32 [#allocation11], 4
      %s60 = int_to_ptr.vmem [resolvable:$true] %s59
      %65 = dma.hbm_to_vmem [thread:$0]  %s58, 512, %s60, [#allocation10], 128, 128, 8
    $region17: #{tpu_custom_call.1} parent=1 // pred_fallthru
      _
    // Predicated region
    $region18: #{tpu_custom_call.1} parent=1 // pred_check
      _
    $region19: #{tpu_custom_call.1} parent=1 // pred_check_branch
      %67 = sbr.rel (0) target = $region21
    $region20: #{tpu_custom_call.1} parent=1 // pred_region
      _
    $region21: #{tpu_custom_call.1} parent=1 // pred_fallthru
      _
    // Predicated region
    $region22: #{tpu_custom_call.1} parent=1 // pred_check
      _
    $region23: #{tpu_custom_call.1} parent=1 // pred_check_branch
      %69 = sbr.rel (0) target = $region25
    $region24: #{tpu_custom_call.1} parent=1 // pred_region
      %71 = vsyncadd [#allocation13], 0
      %s72 = sshll.u32 %s5, 4
      %s73 = int_to_ptr.hbm [resolvable:$true] %s72
      %s74 = sshll.u32 [#allocation12], 4
      %s75 = int_to_ptr.vmem [resolvable:$true] %s74
      %80 = dma.hbm_to_vmem [thread:$0]  %s73, 512, %s75, [#allocation13], 128, 128, 8
    $region25: #{tpu_custom_call.1} parent=1 // pred_fallthru
      _
    // Predicated region
    $region26: #{tpu_custom_call.1} parent=1 // pred_check
      _
    $region27: #{tpu_custom_call.1} parent=1 // pred_check_branch
      %82 = sbr.rel (0) target = $region29
    $region28: #{tpu_custom_call.1} parent=1 // pred_region
      %84 = vsyncadd [#allocation13], 0
      %s85 = sshll.u32 %s6, 4
      %s86 = int_to_ptr.hbm [resolvable:$true] %s85
      %s87 = sshll.u32 [#allocation14], 4
      %s88 = int_to_ptr.vmem [resolvable:$true] %s87
      %93 = dma.hbm_to_vmem [thread:$0]  %s86, 512, %s88, [#allocation13], 128, 128, 8
    $region29: #{tpu_custom_call.1} parent=1 // pred_fallthru
      _
    // Predicated region
    $region30: #{tpu_custom_call.1} parent=1 // pred_check
      _
    $region31: #{tpu_custom_call.1} parent=1 // pred_check_branch
      %95 = sbr.rel (0) target = $region33
    $region32: #{tpu_custom_call.1} parent=1 // pred_region
      _
    $region33: #{tpu_custom_call.1} parent=1 // pred_fallthru
      _
    // Predicated region
    $region34: #{tpu_custom_call.1} parent=1 // pred_check
      _
    $region35: #{tpu_custom_call.1} parent=1 // pred_check_branch
      %97 = sbr.rel (0) target = $region37
    $region36: #{tpu_custom_call.1} parent=1 // pred_region
      %99 = dma.done [#allocation7], 32
    $region37: #{tpu_custom_call.1} parent=1 // pred_fallthru
      _
    // Predicated region
    $region38: #{tpu_custom_call.1} parent=1 // pred_check
      _
    $region39: #{tpu_custom_call.1} parent=1 // pred_check_branch
      %101 = sbr.rel (0) target = $region41
    $region40: #{tpu_custom_call.1} parent=1 // pred_region
      %103 = dma.done [#allocation5], 256
    $region41: #{tpu_custom_call.1} parent=1 // pred_fallthru
      _
    // Predicated region
    $region42: #{tpu_custom_call.1} parent=1 // pred_check
      _
    $region43: #{tpu_custom_call.1} parent=1 // pred_check_branch
      %105 = sbr.rel (0) target = $region45
    $region44: #{tpu_custom_call.1} parent=1 // pred_region
      %107 = dma.done [#allocation10], 512
    $region45: #{tpu_custom_call.1} parent=1 // pred_fallthru
      _
    // Predicated region
    $region46: #{tpu_custom_call.1} parent=1 // pred_check
      _
    $region47: #{tpu_custom_call.1} parent=1 // pred_check_branch
      %109 = sbr.rel (0) target = $region49
    $region48: #{tpu_custom_call.1} parent=1 // pred_region
      %111 = dma.done [#allocation10], 512
    $region49: #{tpu_custom_call.1} parent=1 // pred_fallthru
      _
    // Predicated region
    $region50: #{tpu_custom_call.1} parent=1 // pred_check
      _
    $region51: #{tpu_custom_call.1} parent=1 // pred_check_branch
      %113 = sbr.rel (0) target = $region53
    $region52: #{tpu_custom_call.1} parent=1 // pred_region
      %115 = dma.done [#allocation13], 512
    $region53: #{tpu_custom_call.1} parent=1 // pred_fallthru
      _
    // Predicated region
    $region54: #{tpu_custom_call.1} parent=1 // pred_check
      _
    $region55: #{tpu_custom_call.1} parent=1 // pred_check_branch
      %117 = sbr.rel (0) target = $region57
    $region56: #{tpu_custom_call.1} parent=1 // pred_region
      %119 = dma.done [#allocation13], 512
    $region57: #{tpu_custom_call.1} parent=1 // pred_fallthru
      _
    %120 = sfence
    %v121 = vld [vmem:[#allocation8] sm:$0xff]
    %v122 = vld [vmem:[#allocation8 + $0x8] sm:$0xff]
    %v123 = vld [vmem:[#allocation9] sm:$0xff]
    %v124 = vld [vmem:[#allocation9 + $0x8] sm:$0xff]
    %v125 = vld [vmem:[#allocation9 + $0x10] sm:$0xff]
    %v126 = vld [vmem:[#allocation9 + $0x18] sm:$0xff]
    %v127 = vld [vmem:[%s4] sm:$0x1]
    %v129 = vperm.slane %v127, 0
    %vm131 = vcmask 261120
    %v133 = vsel %vm131, %v121, 0
    %v136 = vsel %vm131, %v122, 0
    %138 = vmatpush.msra.mxu0 0.0
    %139 = vmatpush.msra.mxu0 0.0
    %140 = vmatpush.msra.mxu0 0.0
    %141 = vmatpush.msra.mxu0 0.0
    %142 = vmatpush.msra.mxu0 0.0
    %143 = vmatpush.msra.mxu0 0.0
    %144 = vmatpush.msra.mxu0 0.0
    %145 = vmatpush.msra.mxu0 0.0
    %146 = vmatpush.msra.mxu0 0.0
    %147 = vmatpush.msra.mxu0 0.0
    %148 = vmatpush.msra.mxu0 0.0
    %149 = vmatpush.msra.mxu0 0.0
    %150 = vmatpush.msra.mxu0 %v126
    %151 = vmatpush.msra.mxu0 %v125
    %152 = vmatpush.msra.mxu0 %v124
    %153 = vmatpush.msra.mxu0 %v123
    %154 = vmatmul.f32.gmra.mxu0 %v133
    %v155 = vpop.f32.mrf.mxu0
    %v156 = vadd.f32 %v129, %v155
    %157 = vmatmul.f32.gmra.mxu0 %v136
    %v158 = vpop.f32.mrf.mxu0
    %v159 = vadd.f32 %v129, %v158
    %160 = vdwg.mxu0
    %161 = vst [vmem:[#allocation2] sm:$0xff] %v156
    %162 = vst [vmem:[#allocation2 + $0x8] sm:$0xff] %v159
    %s163 = sld [smem:[#allocation4]]
    %s164 = scalar_lea.vmem [#allocation2], %s163
    %v165 = vld [vmem:[%s164] sm:$0x1]
    %166 = vst [vmem:[#allocation3] sm:$0x1] %v165
    %s167 = sld [smem:[#allocation4 + $0x1]]
    %s168 = scalar_lea.vmem [#allocation2], %s167
    %v169 = vld [vmem:[%s168] sm:$0x1]
    %170 = vst [vmem:[#allocation3 + $0x2] sm:$0x1] %v169
    %s171 = sld [smem:[#allocation4 + $0x2]]
    %s172 = scalar_lea.vmem [#allocation2], %s171
    %v173 = vld [vmem:[%s172] sm:$0x1]
    %174 = vst [vmem:[#allocation3 + $0x4] sm:$0x1] %v173
    %s175 = sld [smem:[#allocation4 + $0x3]]
    %s176 = scalar_lea.vmem [#allocation2], %s175
    %v177 = vld [vmem:[%s176] sm:$0x1]
    %178 = vst [vmem:[#allocation3 + $0x6] sm:$0x1] %v177
    %s179 = sld [smem:[#allocation4 + $0x4]]
    %s180 = scalar_lea.vmem [#allocation2], %s179
    %v181 = vld [vmem:[%s180] sm:$0x1]
    %182 = vst [vmem:[#allocation3 + $0x8] sm:$0x1] %v181
    %s183 = sld [smem:[#allocation4 + $0x5]]
    %s184 = scalar_lea.vmem [#allocation2], %s183
    %v185 = vld [vmem:[%s184] sm:$0x1]
    %186 = vst [vmem:[#allocation3 + $0xa] sm:$0x1] %v185
    %s187 = sld [smem:[#allocation4 + $0x6]]
    %s188 = scalar_lea.vmem [#allocation2], %s187
    %v189 = vld [vmem:[%s188] sm:$0x1]
    %190 = vst [vmem:[#allocation3 + $0xc] sm:$0x1] %v189
    %s191 = sld [smem:[#allocation4 + $0x7]]
    %s192 = scalar_lea.vmem [#allocation2], %s191
    %v193 = vld [vmem:[%s192] sm:$0x1]
    %194 = vst [vmem:[#allocation3 + $0xe] sm:$0x1] %v193
    %s195 = sld [smem:[#allocation4 + $0x80]]
    %s196 = scalar_lea.vmem [#allocation2], %s195
    %v197 = vld [vmem:[%s196] sm:$0x1]
    %198 = vst [vmem:[#allocation3 + $0x1] sm:$0x1] %v197
    %s199 = sld [smem:[#allocation4 + $0x81]]
    %s200 = scalar_lea.vmem [#allocation2], %s199
    %v201 = vld [vmem:[%s200] sm:$0x1]
    %202 = vst [vmem:[#allocation3 + $0x3] sm:$0x1] %v201
    %s203 = sld [smem:[#allocation4 + $0x82]]
    %s204 = scalar_lea.vmem [#allocation2], %s203
    %v205 = vld [vmem:[%s204] sm:$0x1]
    %206 = vst [vmem:[#allocation3 + $0x5] sm:$0x1] %v205
    %s207 = sld [smem:[#allocation4 + $0x83]]
    %s208 = scalar_lea.vmem [#allocation2], %s207
    %v209 = vld [vmem:[%s208] sm:$0x1]
    %210 = vst [vmem:[#allocation3 + $0x7] sm:$0x1] %v209
    %s211 = sld [smem:[#allocation4 + $0x84]]
    %s212 = scalar_lea.vmem [#allocation2], %s211
    %v213 = vld [vmem:[%s212] sm:$0x1]
    %214 = vst [vmem:[#allocation3 + $0x9] sm:$0x1] %v213
    %s215 = sld [smem:[#allocation4 + $0x85]]
    %s216 = scalar_lea.vmem [#allocation2], %s215
    %v217 = vld [vmem:[%s216] sm:$0x1]
    %218 = vst [vmem:[#allocation3 + $0xb] sm:$0x1] %v217
    %s219 = sld [smem:[#allocation4 + $0x86]]
    %s220 = scalar_lea.vmem [#allocation2], %s219
    %v221 = vld [vmem:[%s220] sm:$0x1]
    %222 = vst [vmem:[#allocation3 + $0xd] sm:$0x1] %v221
    %s223 = sld [smem:[#allocation4 + $0x87]]
    %s224 = scalar_lea.vmem [#allocation2], %s223
    %v225 = vld [vmem:[%s224] sm:$0x1]
    %226 = vst [vmem:[#allocation3 + $0xf] sm:$0x1] %v225
    %v227 = vld [vmem:[%s7] sm:$0x1]
    %v229 = vperm.slane %v227, 0
    %v231 = vld [vmem:[#allocation11] sm:$0xff]
    %v232 = vld [vmem:[#allocation11 + $0x8] sm:$0xff]
    %v233 = vld [vmem:[#allocation11 + $0x10] sm:$0xff]
    %v234 = vld [vmem:[#allocation11 + $0x18] sm:$0xff]
    %v235 = vld [vmem:[#allocation3] sm:$0x3]
    %v237 = vsel %vm131, 0.0, 0
    %239 = vmatpush.msra.mxu0 0.0
    %240 = vmatpush.msra.mxu0 0.0
    %241 = vmatpush.msra.mxu0 0.0
    %242 = vmatpush.msra.mxu0 0.0
    %243 = vmatpush.msra.mxu0 0.0
    %244 = vmatpush.msra.mxu0 0.0
    %245 = vmatpush.msra.mxu0 0.0
    %246 = vmatpush.msra.mxu0 0.0
    %247 = vmatpush.msra.mxu0 0.0
    %248 = vmatpush.msra.mxu0 0.0
    %249 = vmatpush.msra.mxu0 0.0
    %250 = vmatpush.msra.mxu0 0.0
    %251 = vmatpush.msra.mxu0 %v234
    %252 = vmatpush.msra.mxu0 %v233
    %253 = vmatpush.msra.mxu0 %v232
    %254 = vmatpush.msra.mxu0 %v231
    %255 = vmatmul.f32.gmra.mxu0 %v237
    %v256 = vpop.f32.mrf.mxu0
    %v257 = vadd.f32 %v235, %v256
    %258 = vdwg.mxu0
    %v259 = vxor.u32 %v257, 2147483648
    %v260 = vmul.f32 %v259, 1.442695
    %v261 = vpow.pop %v260
    %v262 = vadd.f32 %v261, 1.0
    %v263 = vrcp.pop %v262
    %v264 = vmul.f32 %v262, %v263
    %v265 = vsub.f32 1.0, %v264
    %v266 = vmul.f32 %v263, %v265
    %v267 = vadd.f32 %v263, %v266
    %vm268 = vweird.f32 %v262
    %vm269 = vweird.f32 %v263
    %vm270 = vmor %vm268, %vm269
    %v271 = vsel %vm270, %v263, %v267
    %v272 = vand.u32 2147483647, %v262
    %vm273 = vcmp.eq.f32.partialorder %v272, 8.507059e+37
    %v274 = vand.u32 %v262, 2147483648
    %v275 = vor.u32 1.1754944e-38, %v274
    %v276 = vsel %vm273, %v275, %v271
    %v277 = vmul.f32 1.0, %v276
    %v278 = vtanh.pop %v257
    %v279 = vmul.f32 %v277, 0.0
    %281 = vrot.lane.b32.xlu0 %v278, 64
    %v282 = vpop.permute.xlu0 %281
    %v284 = vmul.f32 %v277, %v282
    %286 = vrot.lane.b32.xlu0 %v284, 32
    %v287 = vpop.permute.xlu0 %286
    %v289 = vadd.f32 %v279, %v287
    %v290 = vtanh.pop %v289
    %292 = vrot.lane.b32.xlu0 %v290, 64
    %v293 = vpop.permute.xlu0 %292
    %v295 = vmul.f32 %v277, %v293
    %v296 = vld [vmem:[#allocation14] sm:$0xff]
    %v297 = vld [vmem:[#allocation14 + $0x8] sm:$0xff]
    %v298 = vld [vmem:[#allocation14 + $0x10] sm:$0xff]
    %v299 = vld [vmem:[#allocation14 + $0x18] sm:$0xff]
    %v300 = vld [vmem:[#allocation12] sm:$0xff]
    %v301 = vld [vmem:[#allocation12 + $0x8] sm:$0xff]
    %v302 = vld [vmem:[#allocation12 + $0x10] sm:$0xff]
    %v303 = vld [vmem:[#allocation12 + $0x18] sm:$0xff]
    %305 = vrot.lane.b32.xlu0 %v295, 32
    %v306 = vpop.permute.xlu0 %305
    %v307 = vsel %vm131, %v306, 0
    %309 = vmatpush.msra.mxu0 0.0
    %310 = vmatpush.msra.mxu0 0.0
    %311 = vmatpush.msra.mxu0 0.0
    %312 = vmatpush.msra.mxu0 0.0
    %313 = vmatpush.msra.mxu0 0.0
    %314 = vmatpush.msra.mxu0 0.0
    %315 = vmatpush.msra.mxu0 0.0
    %316 = vmatpush.msra.mxu0 0.0
    %317 = vmatpush.msra.mxu0 0.0
    %318 = vmatpush.msra.mxu0 0.0
    %319 = vmatpush.msra.mxu0 0.0
    %320 = vmatpush.msra.mxu0 0.0
    %321 = vmatpush.msra.mxu0 %v303
    %322 = vmatpush.msra.mxu0 %v302
    %323 = vmatpush.msra.mxu0 %v301
    %324 = vmatpush.msra.mxu0 %v300
    %325 = vmatmul.f32.gmra.mxu0 %v307
    %v326 = vpop.f32.mrf.mxu0
    %v327 = vadd.f32 0.0, %v326
    %328 = vdwg.mxu0
    %329 = vmatpush.msra.mxu0 0.0
    %330 = vmatpush.msra.mxu0 0.0
    %331 = vmatpush.msra.mxu0 0.0
    %332 = vmatpush.msra.mxu0 0.0
    %333 = vmatpush.msra.mxu0 0.0
    %334 = vmatpush.msra.mxu0 0.0
    %335 = vmatpush.msra.mxu0 0.0
    %336 = vmatpush.msra.mxu0 0.0
    %337 = vmatpush.msra.mxu0 0.0
    %338 = vmatpush.msra.mxu0 0.0
    %339 = vmatpush.msra.mxu0 0.0
    %340 = vmatpush.msra.mxu0 0.0
    %341 = vmatpush.msra.mxu0 %v299
    %342 = vmatpush.msra.mxu0 %v298
    %343 = vmatpush.msra.mxu0 %v297
    %344 = vmatpush.msra.mxu0 %v296
    %345 = vmatmul.f32.gmra.mxu0 %v237
    %v346 = vpop.f32.mrf.mxu0
    %v347 = vadd.f32 %v327, %v346
    %348 = vdwg.mxu0
    %v349 = vadd.f32 %v347, %v229
    %v350 = vxor.u32 %v349, 2147483648
    %v351 = vmul.f32 %v350, 1.442695
    %v352 = vpow.pop %v351
    %v353 = vadd.f32 %v352, 1.0
    %v354 = vrcp.pop %v353
    %v355 = vmul.f32 %v353, %v354
    %v356 = vsub.f32 1.0, %v355
    %v357 = vmul.f32 %v354, %v356
    %v358 = vadd.f32 %v354, %v357
    %vm359 = vweird.f32 %v353
    %vm360 = vweird.f32 %v354
    %vm361 = vmor %vm359, %vm360
    %v362 = vsel %vm361, %v354, %v358
    %v363 = vand.u32 2147483647, %v353
    %vm364 = vcmp.eq.f32.partialorder %v363, 8.507059e+37
    %v365 = vand.u32 %v353, 2147483648
    %v366 = vor.u32 1.1754944e-38, %v365
    %v367 = vsel %vm364, %v366, %v362
    %v368 = vmul.f32 1.0, %v367
    %v369 = vtanh.pop %v349
    %v370 = vmul.f32 %v368, 0.0
    %372 = vrot.lane.b32.xlu0 %v369, 64
    %v373 = vpop.permute.xlu0 %372
    %v375 = vmul.f32 %v368, %v373
    %377 = vrot.lane.b32.xlu0 %v375, 32
    %v378 = vpop.permute.xlu0 %377
    %v380 = vadd.f32 %v370, %v378
    %v381 = vtanh.pop %v380
    %383 = vrot.lane.b32.xlu0 %v381, 64
    %v384 = vpop.permute.xlu0 %383
    %v386 = vmul.f32 %v368, %v384
    %388 = vrot.lane.b32.xlu0 %v386, 32
    %v389 = vpop.permute.xlu0 %388
    %vm391 = vcmask 254976
    %392 = vst.msk [vmem:[#allocation15] sm:$0x3] %vm391, %v389
    %v393 = vld [vmem:[#allocation11] sm:$0xff]
    %v394 = vld [vmem:[#allocation11 + $0x8] sm:$0xff]
    %v395 = vld [vmem:[#allocation11 + $0x10] sm:$0xff]
    %v396 = vld [vmem:[#allocation11 + $0x18] sm:$0xff]
    %v397 = vld [vmem:[#allocation3 + $0x2] sm:$0x3]
    %398 = vmatpush.msra.mxu0 0.0
    %399 = vmatpush.msra.mxu0 0.0
    %400 = vmatpush.msra.mxu0 0.0
    %401 = vmatpush.msra.mxu0 0.0
    %402 = vmatpush.msra.mxu0 0.0
    %403 = vmatpush.msra.mxu0 0.0
    %404 = vmatpush.msra.mxu0 0.0
    %405 = vmatpush.msra.mxu0 0.0
    %406 = vmatpush.msra.mxu0 0.0
    %407 = vmatpush.msra.mxu0 0.0
    %408 = vmatpush.msra.mxu0 0.0
    %409 = vmatpush.msra.mxu0 0.0
    %410 = vmatpush.msra.mxu0 %v396
    %411 = vmatpush.msra.mxu0 %v395
    %412 = vmatpush.msra.mxu0 %v394
    %413 = vmatpush.msra.mxu0 %v393
    %414 = vmatmul.f32.gmra.mxu0 %v307
    %v415 = vpop.f32.mrf.mxu0
    %v416 = vadd.f32 %v397, %v415
    %417 = vdwg.mxu0
    %v418 = vxor.u32 %v416, 2147483648
    %v419 = vmul.f32 %v418, 1.442695
    %v420 = vpow.pop %v419
    %v421 = vadd.f32 %v420, 1.0
    %v422 = vrcp.pop %v421
    %v423 = vmul.f32 %v421, %v422
    %v424 = vsub.f32 1.0, %v423
    %v425 = vmul.f32 %v422, %v424
    %v426 = vadd.f32 %v422, %v425
    %vm427 = vweird.f32 %v421
    %vm428 = vweird.f32 %v422
    %vm429 = vmor %vm427, %vm428
    %v430 = vsel %vm429, %v422, %v426
    %v431 = vand.u32 2147483647, %v421
    %vm432 = vcmp.eq.f32.partialorder %v431, 8.507059e+37
    %v433 = vand.u32 %v421, 2147483648
    %v434 = vor.u32 1.1754944e-38, %v433
    %v435 = vsel %vm432, %v434, %v430
    %v436 = vmul.f32 1.0, %v435
    %v437 = vtanh.pop %v416
    %v438 = vmul.f32 %v436, %v289
    %440 = vrot.lane.b32.xlu0 %v437, 64
    %v441 = vpop.permute.xlu0 %440
    %v443 = vmul.f32 %v436, %v441
    %445 = vrot.lane.b32.xlu0 %v443, 32
    %v446 = vpop.permute.xlu0 %445
    %v448 = vadd.f32 %v438, %v446
    %v449 = vtanh.pop %v448
    %451 = vrot.lane.b32.xlu0 %v449, 64
    %v452 = vpop.permute.xlu0 %451
    %v454 = vmul.f32 %v436, %v452
    %v455 = vld [vmem:[#allocation14] sm:$0xff]
    %v456 = vld [vmem:[#allocation14 + $0x8] sm:$0xff]
    %v457 = vld [vmem:[#allocation14 + $0x10] sm:$0xff]
    %v458 = vld [vmem:[#allocation14 + $0x18] sm:$0xff]
    %v459 = vld [vmem:[#allocation12] sm:$0xff]
    %v460 = vld [vmem:[#allocation12 + $0x8] sm:$0xff]
    %v461 = vld [vmem:[#allocation12 + $0x10] sm:$0xff]
    %v462 = vld [vmem:[#allocation12 + $0x18] sm:$0xff]
    %464 = vrot.lane.b32.xlu0 %v454, 32
    %v465 = vpop.permute.xlu0 %464
    %v466 = vsel %vm131, %v465, 0
    %468 = vmatpush.msra.mxu0 0.0
    %469 = vmatpush.msra.mxu0 0.0
    %470 = vmatpush.msra.mxu0 0.0
    %471 = vmatpush.msra.mxu0 0.0
    %472 = vmatpush.msra.mxu0 0.0
    %473 = vmatpush.msra.mxu0 0.0
    %474 = vmatpush.msra.mxu0 0.0
    %475 = vmatpush.msra.mxu0 0.0
    %476 = vmatpush.msra.mxu0 0.0
    %477 = vmatpush.msra.mxu0 0.0
    %478 = vmatpush.msra.mxu0 0.0
    %479 = vmatpush.msra.mxu0 0.0
    %480 = vmatpush.msra.mxu0 %v462
    %481 = vmatpush.msra.mxu0 %v461
    %482 = vmatpush.msra.mxu0 %v460
    %483 = vmatpush.msra.mxu0 %v459
    %484 = vmatmul.f32.gmra.mxu0 %v466
    %v485 = vpop.f32.mrf.mxu0
    %v486 = vadd.f32 0.0, %v485
    %487 = vdwg.mxu0
    %v488 = vsel %vm131, %v389, 0
    %490 = vmatpush.msra.mxu0 0.0
    %491 = vmatpush.msra.mxu0 0.0
    %492 = vmatpush.msra.mxu0 0.0
    %493 = vmatpush.msra.mxu0 0.0
    %494 = vmatpush.msra.mxu0 0.0
    %495 = vmatpush.msra.mxu0 0.0
    %496 = vmatpush.msra.mxu0 0.0
    %497 = vmatpush.msra.mxu0 0.0
    %498 = vmatpush.msra.mxu0 0.0
    %499 = vmatpush.msra.mxu0 0.0
    %500 = vmatpush.msra.mxu0 0.0
    %501 = vmatpush.msra.mxu0 0.0
    %502 = vmatpush.msra.mxu0 %v458
    %503 = vmatpush.msra.mxu0 %v457
    %504 = vmatpush.msra.mxu0 %v456
    %505 = vmatpush.msra.mxu0 %v455
    %506 = vmatmul.f32.gmra.mxu0 %v488
    %v507 = vpop.f32.mrf.mxu0
    %v508 = vadd.f32 %v486, %v507
    %509 = vdwg.mxu0
    %v510 = vadd.f32 %v508, %v229
    %v511 = vxor.u32 %v510, 2147483648
    %v512 = vmul.f32 %v511, 1.442695
    %v513 = vpow.pop %v512
    %v514 = vadd.f32 %v513, 1.0
    %v515 = vrcp.pop %v514
    %v516 = vmul.f32 %v514, %v515
    %v517 = vsub.f32 1.0, %v516
    %v518 = vmul.f32 %v515, %v517
    %v519 = vadd.f32 %v515, %v518
    %vm520 = vweird.f32 %v514
    %vm521 = vweird.f32 %v515
    %vm522 = vmor %vm520, %vm521
    %v523 = vsel %vm522, %v515, %v519
    %v524 = vand.u32 2147483647, %v514
    %vm525 = vcmp.eq.f32.partialorder %v524, 8.507059e+37
    %v526 = vand.u32 %v514, 2147483648
    %v527 = vor.u32 1.1754944e-38, %v526
    %v528 = vsel %vm525, %v527, %v523
    %v529 = vmul.f32 1.0, %v528
    %v530 = vtanh.pop %v510
    %v531 = vmul.f32 %v529, %v380
    %533 = vrot.lane.b32.xlu0 %v530, 64
    %v534 = vpop.permute.xlu0 %533
    %v536 = vmul.f32 %v529, %v534
    %538 = vrot.lane.b32.xlu0 %v536, 32
    %v539 = vpop.permute.xlu0 %538
    %v541 = vadd.f32 %v531, %v539
    %v542 = vtanh.pop %v541
    %544 = vrot.lane.b32.xlu0 %v542, 64
    %v545 = vpop.permute.xlu0 %544
    %v547 = vmul.f32 %v529, %v545
    %549 = vrot.lane.b32.xlu0 %v547, 64
    %v550 = vpop.permute.xlu0 %549
    %vm552 = vcmask 517376
    %553 = vst.msk [vmem:[#allocation15] sm:$0x3] %vm552, %v550
    %v554 = vld [vmem:[#allocation11] sm:$0xff]
    %v555 = vld [vmem:[#allocation11 + $0x8] sm:$0xff]
    %v556 = vld [vmem:[#allocation11 + $0x10] sm:$0xff]
    %v557 = vld [vmem:[#allocation11 + $0x18] sm:$0xff]
    %v558 = vld [vmem:[#allocation3 + $0x4] sm:$0x3]
    %559 = vmatpush.msra.mxu0 0.0
    %560 = vmatpush.msra.mxu0 0.0
    %561 = vmatpush.msra.mxu0 0.0
    %562 = vmatpush.msra.mxu0 0.0
    %563 = vmatpush.msra.mxu0 0.0
    %564 = vmatpush.msra.mxu0 0.0
    %565 = vmatpush.msra.mxu0 0.0
    %566 = vmatpush.msra.mxu0 0.0
    %567 = vmatpush.msra.mxu0 0.0
    %568 = vmatpush.msra.mxu0 0.0
    %569 = vmatpush.msra.mxu0 0.0
    %570 = vmatpush.msra.mxu0 0.0
    %571 = vmatpush.msra.mxu0 %v557
    %572 = vmatpush.msra.mxu0 %v556
    %573 = vmatpush.msra.mxu0 %v555
    %574 = vmatpush.msra.mxu0 %v554
    %575 = vmatmul.f32.gmra.mxu0 %v466
    %v576 = vpop.f32.mrf.mxu0
    %v577 = vadd.f32 %v558, %v576
    %578 = vdwg.mxu0
    %v579 = vxor.u32 %v577, 2147483648
    %v580 = vmul.f32 %v579, 1.442695
    %v581 = vpow.pop %v580
    %v582 = vadd.f32 %v581, 1.0
    %v583 = vrcp.pop %v582
    %v584 = vmul.f32 %v582, %v583
    %v585 = vsub.f32 1.0, %v584
    %v586 = vmul.f32 %v583, %v585
    %v587 = vadd.f32 %v583, %v586
    %vm588 = vweird.f32 %v582
    %vm589 = vweird.f32 %v583
    %vm590 = vmor %vm588, %vm589
    %v591 = vsel %vm590, %v583, %v587
    %v592 = vand.u32 2147483647, %v582
    %vm593 = vcmp.eq.f32.partialorder %v592, 8.507059e+37
    %v594 = vand.u32 %v582, 2147483648
    %v595 = vor.u32 1.1754944e-38, %v594
    %v596 = vsel %vm593, %v595, %v591
    %v597 = vmul.f32 1.0, %v596
    %v598 = vtanh.pop %v577
    %v599 = vmul.f32 %v597, %v448
    %601 = vrot.lane.b32.xlu0 %v598, 64
    %v602 = vpop.permute.xlu0 %601
    %v604 = vmul.f32 %v597, %v602
    %606 = vrot.lane.b32.xlu0 %v604, 32
    %v607 = vpop.permute.xlu0 %606
    %v609 = vadd.f32 %v599, %v607
    %v610 = vtanh.pop %v609
    %612 = vrot.lane.b32.xlu0 %v610, 64
    %v613 = vpop.permute.xlu0 %612
    %v615 = vmul.f32 %v597, %v613
    %v616 = vld [vmem:[#allocation14] sm:$0xff]
    %v617 = vld [vmem:[#allocation14 + $0x8] sm:$0xff]
    %v618 = vld [vmem:[#allocation14 + $0x10] sm:$0xff]
    %v619 = vld [vmem:[#allocation14 + $0x18] sm:$0xff]
    %v620 = vld [vmem:[#allocation12] sm:$0xff]
    %v621 = vld [vmem:[#allocation12 + $0x8] sm:$0xff]
    %v622 = vld [vmem:[#allocation12 + $0x10] sm:$0xff]
    %v623 = vld [vmem:[#allocation12 + $0x18] sm:$0xff]
    %625 = vrot.lane.b32.xlu0 %v615, 32
    %v626 = vpop.permute.xlu0 %625
    %v627 = vsel %vm131, %v626, 0
    %629 = vmatpush.msra.mxu0 0.0
    %630 = vmatpush.msra.mxu0 0.0
    %631 = vmatpush.msra.mxu0 0.0
    %632 = vmatpush.msra.mxu0 0.0
    %633 = vmatpush.msra.mxu0 0.0
    %634 = vmatpush.msra.mxu0 0.0
    %635 = vmatpush.msra.mxu0 0.0
    %636 = vmatpush.msra.mxu0 0.0
    %637 = vmatpush.msra.mxu0 0.0
    %638 = vmatpush.msra.mxu0 0.0
    %639 = vmatpush.msra.mxu0 0.0
    %640 = vmatpush.msra.mxu0 0.0
    %641 = vmatpush.msra.mxu0 %v623
    %642 = vmatpush.msra.mxu0 %v622
    %643 = vmatpush.msra.mxu0 %v621
    %644 = vmatpush.msra.mxu0 %v620
    %645 = vmatmul.f32.gmra.mxu0 %v627
    %v646 = vpop.f32.mrf.mxu0
    %v647 = vadd.f32 0.0, %v646
    %648 = vdwg.mxu0
    %649 = vrot.lane.b32.xlu0 %v547, 32
    %v650 = vpop.permute.xlu0 %649
    %v651 = vsel %vm131, %v650, 0
    %653 = vmatpush.msra.mxu0 0.0
    %654 = vmatpush.msra.mxu0 0.0
    %655 = vmatpush.msra.mxu0 0.0
    %656 = vmatpush.msra.mxu0 0.0
    %657 = vmatpush.msra.mxu0 0.0
    %658 = vmatpush.msra.mxu0 0.0
    %659 = vmatpush.msra.mxu0 0.0
    %660 = vmatpush.msra.mxu0 0.0
    %661 = vmatpush.msra.mxu0 0.0
    %662 = vmatpush.msra.mxu0 0.0
    %663 = vmatpush.msra.mxu0 0.0
    %664 = vmatpush.msra.mxu0 0.0
    %665 = vmatpush.msra.mxu0 %v619
    %666 = vmatpush.msra.mxu0 %v618
    %667 = vmatpush.msra.mxu0 %v617
    %668 = vmatpush.msra.mxu0 %v616
    %669 = vmatmul.f32.gmra.mxu0 %v651
    %v670 = vpop.f32.mrf.mxu0
    %v671 = vadd.f32 %v647, %v670
    %672 = vdwg.mxu0
    %v673 = vadd.f32 %v671, %v229
    %v674 = vxor.u32 %v673, 2147483648
    %v675 = vmul.f32 %v674, 1.442695
    %v676 = vpow.pop %v675
    %v677 = vadd.f32 %v676, 1.0
    %v678 = vrcp.pop %v677
    %v679 = vmul.f32 %v677, %v678
    %v680 = vsub.f32 1.0, %v679
    %v681 = vmul.f32 %v678, %v680
    %v682 = vadd.f32 %v678, %v681
    %vm683 = vweird.f32 %v677
    %vm684 = vweird.f32 %v678
    %vm685 = vmor %vm683, %vm684
    %v686 = vsel %vm685, %v678, %v682
    %v687 = vand.u32 2147483647, %v677
    %vm688 = vcmp.eq.f32.partialorder %v687, 8.507059e+37
    %v689 = vand.u32 %v677, 2147483648
    %v690 = vor.u32 1.1754944e-38, %v689
    %v691 = vsel %vm688, %v690, %v686
    %v692 = vmul.f32 1.0, %v691
    %v693 = vtanh.pop %v673
    %v694 = vmul.f32 %v692, %v541
    %696 = vrot.lane.b32.xlu0 %v693, 64
    %v697 = vpop.permute.xlu0 %696
    %v699 = vmul.f32 %v692, %v697
    %701 = vrot.lane.b32.xlu0 %v699, 32
    %v702 = vpop.permute.xlu0 %701
    %v704 = vadd.f32 %v694, %v702
    %v705 = vtanh.pop %v704
    %707 = vrot.lane.b32.xlu0 %v705, 64
    %v708 = vpop.permute.xlu0 %707
    %v710 = vmul.f32 %v692, %v708
    %712 = vrot.lane.b32.xlu0 %v710, 96
    %v713 = vpop.permute.xlu0 %712
    %vm715 = vcmask 779776
    %716 = vst.msk [vmem:[#allocation15] sm:$0x3] %vm715, %v713
    %v717 = vld [vmem:[#allocation11] sm:$0xff]
    %v718 = vld [vmem:[#allocation11 + $0x8] sm:$0xff]
    %v719 = vld [vmem:[#allocation11 + $0x10] sm:$0xff]
    %v720 = vld [vmem:[#allocation11 + $0x18] sm:$0xff]
    %v721 = vld [vmem:[#allocation3 + $0x6] sm:$0x3]
    %722 = vmatpush.msra.mxu0 0.0
    %723 = vmatpush.msra.mxu0 0.0
    %724 = vmatpush.msra.mxu0 0.0
    %725 = vmatpush.msra.mxu0 0.0
    %726 = vmatpush.msra.mxu0 0.0
    %727 = vmatpush.msra.mxu0 0.0
    %728 = vmatpush.msra.mxu0 0.0
    %729 = vmatpush.msra.mxu0 0.0
    %730 = vmatpush.msra.mxu0 0.0
    %731 = vmatpush.msra.mxu0 0.0
    %732 = vmatpush.msra.mxu0 0.0
    %733 = vmatpush.msra.mxu0 0.0
    %734 = vmatpush.msra.mxu0 %v720
    %735 = vmatpush.msra.mxu0 %v719
    %736 = vmatpush.msra.mxu0 %v718
    %737 = vmatpush.msra.mxu0 %v717
    %738 = vmatmul.f32.gmra.mxu0 %v627
    %v739 = vpop.f32.mrf.mxu0
    %v740 = vadd.f32 %v721, %v739
    %741 = vdwg.mxu0
    %v742 = vxor.u32 %v740, 2147483648
    %v743 = vmul.f32 %v742, 1.442695
    %v744 = vpow.pop %v743
    %v745 = vadd.f32 %v744, 1.0
    %v746 = vrcp.pop %v745
    %v747 = vmul.f32 %v745, %v746
    %v748 = vsub.f32 1.0, %v747
    %v749 = vmul.f32 %v746, %v748
    %v750 = vadd.f32 %v746, %v749
    %vm751 = vweird.f32 %v745
    %vm752 = vweird.f32 %v746
    %vm753 = vmor %vm751, %vm752
    %v754 = vsel %vm753, %v746, %v750
    %v755 = vand.u32 2147483647, %v745
    %vm756 = vcmp.eq.f32.partialorder %v755, 8.507059e+37
    %v757 = vand.u32 %v745, 2147483648
    %v758 = vor.u32 1.1754944e-38, %v757
    %v759 = vsel %vm756, %v758, %v754
    %v760 = vmul.f32 1.0, %v759
    %v761 = vtanh.pop %v740
    %v762 = vmul.f32 %v760, %v609
    %764 = vrot.lane.b32.xlu0 %v761, 64
    %v765 = vpop.permute.xlu0 %764
    %v767 = vmul.f32 %v760, %v765
    %769 = vrot.lane.b32.xlu0 %v767, 32
    %v770 = vpop.permute.xlu0 %769
    %v772 = vadd.f32 %v762, %v770
    %v773 = vtanh.pop %v772
    %775 = vrot.lane.b32.xlu0 %v773, 64
    %v776 = vpop.permute.xlu0 %775
    %v778 = vmul.f32 %v760, %v776
    %v779 = vld [vmem:[#allocation14] sm:$0xff]
    %v780 = vld [vmem:[#allocation14 + $0x8] sm:$0xff]
    %v781 = vld [vmem:[#allocation14 + $0x10] sm:$0xff]
    %v782 = vld [vmem:[#allocation14 + $0x18] sm:$0xff]
    %v783 = vld [vmem:[#allocation12] sm:$0xff]
    %v784 = vld [vmem:[#allocation12 + $0x8] sm:$0xff]
    %v785 = vld [vmem:[#allocation12 + $0x10] sm:$0xff]
    %v786 = vld [vmem:[#allocation12 + $0x18] sm:$0xff]
    %788 = vrot.lane.b32.xlu0 %v778, 32
    %v789 = vpop.permute.xlu0 %788
    %v790 = vsel %vm131, %v789, 0
    %792 = vmatpush.msra.mxu0 0.0
    %793 = vmatpush.msra.mxu0 0.0
    %794 = vmatpush.msra.mxu0 0.0
    %795 = vmatpush.msra.mxu0 0.0
    %796 = vmatpush.msra.mxu0 0.0
    %797 = vmatpush.msra.mxu0 0.0
    %798 = vmatpush.msra.mxu0 0.0
    %799 = vmatpush.msra.mxu0 0.0
    %800 = vmatpush.msra.mxu0 0.0
    %801 = vmatpush.msra.mxu0 0.0
    %802 = vmatpush.msra.mxu0 0.0
    %803 = vmatpush.msra.mxu0 0.0
    %804 = vmatpush.msra.mxu0 %v786
    %805 = vmatpush.msra.mxu0 %v785
    %806 = vmatpush.msra.mxu0 %v784
    %807 = vmatpush.msra.mxu0 %v783
    %808 = vmatmul.f32.gmra.mxu0 %v790
    %v809 = vpop.f32.mrf.mxu0
    %v810 = vadd.f32 0.0, %v809
    %811 = vdwg.mxu0
    %812 = vrot.lane.b32.xlu0 %v710, 32
    %v813 = vpop.permute.xlu0 %812
    %v814 = vsel %vm131, %v813, 0
    %816 = vmatpush.msra.mxu0 0.0
    %817 = vmatpush.msra.mxu0 0.0
    %818 = vmatpush.msra.mxu0 0.0
    %819 = vmatpush.msra.mxu0 0.0
    %820 = vmatpush.msra.mxu0 0.0
    %821 = vmatpush.msra.mxu0 0.0
    %822 = vmatpush.msra.mxu0 0.0
    %823 = vmatpush.msra.mxu0 0.0
    %824 = vmatpush.msra.mxu0 0.0
    %825 = vmatpush.msra.mxu0 0.0
    %826 = vmatpush.msra.mxu0 0.0
    %827 = vmatpush.msra.mxu0 0.0
    %828 = vmatpush.msra.mxu0 %v782
    %829 = vmatpush.msra.mxu0 %v781
    %830 = vmatpush.msra.mxu0 %v780
    %831 = vmatpush.msra.mxu0 %v779
    %832 = vmatmul.f32.gmra.mxu0 %v814
    %v833 = vpop.f32.mrf.mxu0
    %v834 = vadd.f32 %v810, %v833
    %835 = vdwg.mxu0
    %v836 = vadd.f32 %v834, %v229
    %v837 = vxor.u32 %v836, 2147483648
    %v838 = vmul.f32 %v837, 1.442695
    %v839 = vpow.pop %v838
    %v840 = vadd.f32 %v839, 1.0
    %v841 = vrcp.pop %v840
    %v842 = vmul.f32 %v840, %v841
    %v843 = vsub.f32 1.0, %v842
    %v844 = vmul.f32 %v841, %v843
    %v845 = vadd.f32 %v841, %v844
    %vm846 = vweird.f32 %v840
    %vm847 = vweird.f32 %v841
    %vm848 = vmor %vm846, %vm847
    %v849 = vsel %vm848, %v841, %v845
    %v850 = vand.u32 2147483647, %v840
    %vm851 = vcmp.eq.f32.partialorder %v850, 8.507059e+37
    %v852 = vand.u32 %v840, 2147483648
    %v853 = vor.u32 1.1754944e-38, %v852
    %v854 = vsel %vm851, %v853, %v849
    %v855 = vmul.f32 1.0, %v854
    %v856 = vtanh.pop %v836
    %v857 = vmul.f32 %v855, %v704
    %859 = vrot.lane.b32.xlu0 %v856, 64
    %v860 = vpop.permute.xlu0 %859
    %v862 = vmul.f32 %v855, %v860
    %864 = vrot.lane.b32.xlu0 %v862, 32
    %v865 = vpop.permute.xlu0 %864
    %v867 = vadd.f32 %v857, %v865
    %v868 = vtanh.pop %v867
    %870 = vrot.lane.b32.xlu0 %v868, 64
    %v871 = vpop.permute.xlu0 %870
    %v873 = vmul.f32 %v855, %v871
    %vm874 = vcmask 1042176
    %875 = vst.msk [vmem:[#allocation15] sm:$0x3] %vm874, %v873
    %v876 = vld [vmem:[#allocation11] sm:$0xff]
    %v877 = vld [vmem:[#allocation11 + $0x8] sm:$0xff]
    %v878 = vld [vmem:[#allocation11 + $0x10] sm:$0xff]
    %v879 = vld [vmem:[#allocation11 + $0x18] sm:$0xff]
    %v880 = vld [vmem:[#allocation3 + $0x8] sm:$0x3]
    %881 = vmatpush.msra.mxu0 0.0
    %882 = vmatpush.msra.mxu0 0.0
    %883 = vmatpush.msra.mxu0 0.0
    %884 = vmatpush.msra.mxu0 0.0
    %885 = vmatpush.msra.mxu0 0.0
    %886 = vmatpush.msra.mxu0 0.0
    %887 = vmatpush.msra.mxu0 0.0
    %888 = vmatpush.msra.mxu0 0.0
    %889 = vmatpush.msra.mxu0 0.0
    %890 = vmatpush.msra.mxu0 0.0
    %891 = vmatpush.msra.mxu0 0.0
    %892 = vmatpush.msra.mxu0 0.0
    %893 = vmatpush.msra.mxu0 %v879
    %894 = vmatpush.msra.mxu0 %v878
    %895 = vmatpush.msra.mxu0 %v877
    %896 = vmatpush.msra.mxu0 %v876
    %897 = vmatmul.f32.gmra.mxu0 %v790
    %v898 = vpop.f32.mrf.mxu0
    %v899 = vadd.f32 %v880, %v898
    %900 = vdwg.mxu0
    %v901 = vxor.u32 %v899, 2147483648
    %v902 = vmul.f32 %v901, 1.442695
    %v903 = vpow.pop %v902
    %v904 = vadd.f32 %v903, 1.0
    %v905 = vrcp.pop %v904
    %v906 = vmul.f32 %v904, %v905
    %v907 = vsub.f32 1.0, %v906
    %v908 = vmul.f32 %v905, %v907
    %v909 = vadd.f32 %v905, %v908
    %vm910 = vweird.f32 %v904
    %vm911 = vweird.f32 %v905
    %vm912 = vmor %vm910, %vm911
    %v913 = vsel %vm912, %v905, %v909
    %v914 = vand.u32 2147483647, %v904
    %vm915 = vcmp.eq.f32.partialorder %v914, 8.507059e+37
    %v916 = vand.u32 %v904, 2147483648
    %v917 = vor.u32 1.1754944e-38, %v916
    %v918 = vsel %vm915, %v917, %v913
    %v919 = vmul.f32 1.0, %v918
    %v920 = vtanh.pop %v899
    %v921 = vmul.f32 %v919, %v772
    %923 = vrot.lane.b32.xlu0 %v920, 64
    %v924 = vpop.permute.xlu0 %923
    %v926 = vmul.f32 %v919, %v924
    %928 = vrot.lane.b32.xlu0 %v926, 32
    %v929 = vpop.permute.xlu0 %928
    %v931 = vadd.f32 %v921, %v929
    %v932 = vtanh.pop %v931
    %934 = vrot.lane.b32.xlu0 %v932, 64
    %v935 = vpop.permute.xlu0 %934
    %v937 = vmul.f32 %v919, %v935
    %v938 = vld [vmem:[#allocation14] sm:$0xff]
    %v939 = vld [vmem:[#allocation14 + $0x8] sm:$0xff]
    %v940 = vld [vmem:[#allocation14 + $0x10] sm:$0xff]
    %v941 = vld [vmem:[#allocation14 + $0x18] sm:$0xff]
    %v942 = vld [vmem:[#allocation12] sm:$0xff]
    %v943 = vld [vmem:[#allocation12 + $0x8] sm:$0xff]
    %v944 = vld [vmem:[#allocation12 + $0x10] sm:$0xff]
    %v945 = vld [vmem:[#allocation12 + $0x18] sm:$0xff]
    %947 = vrot.lane.b32.xlu0 %v937, 32
    %v948 = vpop.permute.xlu0 %947
    %v949 = vsel %vm131, %v948, 0
    %951 = vmatpush.msra.mxu0 0.0
    %952 = vmatpush.msra.mxu0 0.0
    %953 = vmatpush.msra.mxu0 0.0
    %954 = vmatpush.msra.mxu0 0.0
    %955 = vmatpush.msra.mxu0 0.0
    %956 = vmatpush.msra.mxu0 0.0
    %957 = vmatpush.msra.mxu0 0.0
    %958 = vmatpush.msra.mxu0 0.0
    %959 = vmatpush.msra.mxu0 0.0
    %960 = vmatpush.msra.mxu0 0.0
    %961 = vmatpush.msra.mxu0 0.0
    %962 = vmatpush.msra.mxu0 0.0
    %963 = vmatpush.msra.mxu0 %v945
    %964 = vmatpush.msra.mxu0 %v944
    %965 = vmatpush.msra.mxu0 %v943
    %966 = vmatpush.msra.mxu0 %v942
    %967 = vmatmul.f32.gmra.mxu0 %v949
    %v968 = vpop.f32.mrf.mxu0
    %v969 = vadd.f32 0.0, %v968
    %970 = vdwg.mxu0
    %972 = vrot.lane.b32.xlu0 %v873, 32
    %v973 = vpop.permute.xlu0 %972
    %v974 = vsel %vm131, %v973, 0
    %976 = vmatpush.msra.mxu0 0.0
    %977 = vmatpush.msra.mxu0 0.0
    %978 = vmatpush.msra.mxu0 0.0
    %979 = vmatpush.msra.mxu0 0.0
    %980 = vmatpush.msra.mxu0 0.0
    %981 = vmatpush.msra.mxu0 0.0
    %982 = vmatpush.msra.mxu0 0.0
    %983 = vmatpush.msra.mxu0 0.0
    %984 = vmatpush.msra.mxu0 0.0
    %985 = vmatpush.msra.mxu0 0.0
    %986 = vmatpush.msra.mxu0 0.0
    %987 = vmatpush.msra.mxu0 0.0
    %988 = vmatpush.msra.mxu0 %v941
    %989 = vmatpush.msra.mxu0 %v940
    %990 = vmatpush.msra.mxu0 %v939
    %991 = vmatpush.msra.mxu0 %v938
    %992 = vmatmul.f32.gmra.mxu0 %v974
    %v993 = vpop.f32.mrf.mxu0
    %v994 = vadd.f32 %v969, %v993
    %995 = vdwg.mxu0
    %v996 = vadd.f32 %v994, %v229
    %v997 = vxor.u32 %v996, 2147483648
    %v998 = vmul.f32 %v997, 1.442695
    %v999 = vpow.pop %v998
    %v1000 = vadd.f32 %v999, 1.0
    %v1001 = vrcp.pop %v1000
    %v1002 = vmul.f32 %v1000, %v1001
    %v1003 = vsub.f32 1.0, %v1002
    %v1004 = vmul.f32 %v1001, %v1003
    %v1005 = vadd.f32 %v1001, %v1004
    %vm1006 = vweird.f32 %v1000
    %vm1007 = vweird.f32 %v1001
    %vm1008 = vmor %vm1006, %vm1007
    %v1009 = vsel %vm1008, %v1001, %v1005
    %v1010 = vand.u32 2147483647, %v1000
    %vm1011 = vcmp.eq.f32.partialorder %v1010, 8.507059e+37
    %v1012 = vand.u32 %v1000, 2147483648
    %v1013 = vor.u32 1.1754944e-38, %v1012
    %v1014 = vsel %vm1011, %v1013, %v1009
    %v1015 = vmul.f32 1.0, %v1014
    %v1016 = vtanh.pop %v996
    %v1017 = vmul.f32 %v1015, %v867
    %1019 = vrot.lane.b32.xlu0 %v1016, 64
    %v1020 = vpop.permute.xlu0 %1019
    %v1022 = vmul.f32 %v1015, %v1020
    %1024 = vrot.lane.b32.xlu0 %v1022, 32
    %v1025 = vpop.permute.xlu0 %1024
    %v1027 = vadd.f32 %v1017, %v1025
    %v1028 = vtanh.pop %v1027
    %1030 = vrot.lane.b32.xlu0 %v1028, 64
    %v1031 = vpop.permute.xlu0 %1030
    %v1033 = vmul.f32 %v1015, %v1031
    %1035 = vrot.lane.b32.xlu0 %v1033, 32
    %v1036 = vpop.permute.xlu0 %1035
    %1038 = vst.msk [vmem:[#allocation15 + $0x2] sm:$0x3] %vm391, %v1036
    %v1039 = vld [vmem:[#allocation11] sm:$0xff]
    %v1040 = vld [vmem:[#allocation11 + $0x8] sm:$0xff]
    %v1041 = vld [vmem:[#allocation11 + $0x10] sm:$0xff]
    %v1042 = vld [vmem:[#allocation11 + $0x18] sm:$0xff]
    %v1043 = vld [vmem:[#allocation3 + $0xa] sm:$0x3]
    %1044 = vmatpush.msra.mxu0 0.0
    %1045 = vmatpush.msra.mxu0 0.0
    %1046 = vmatpush.msra.mxu0 0.0
    %1047 = vmatpush.msra.mxu0 0.0
    %1048 = vmatpush.msra.mxu0 0.0
    %1049 = vmatpush.msra.mxu0 0.0
    %1050 = vmatpush.msra.mxu0 0.0
    %1051 = vmatpush.msra.mxu0 0.0
    %1052 = vmatpush.msra.mxu0 0.0
    %1053 = vmatpush.msra.mxu0 0.0
    %1054 = vmatpush.msra.mxu0 0.0
    %1055 = vmatpush.msra.mxu0 0.0
    %1056 = vmatpush.msra.mxu0 %v1042
    %1057 = vmatpush.msra.mxu0 %v1041
    %1058 = vmatpush.msra.mxu0 %v1040
    %1059 = vmatpush.msra.mxu0 %v1039
    %1060 = vmatmul.f32.gmra.mxu0 %v949
    %v1061 = vpop.f32.mrf.mxu0
    %v1062 = vadd.f32 %v1043, %v1061
    %1063 = vdwg.mxu0
    %v1064 = vxor.u32 %v1062, 2147483648
    %v1065 = vmul.f32 %v1064, 1.442695
    %v1066 = vpow.pop %v1065
    %v1067 = vadd.f32 %v1066, 1.0
    %v1068 = vrcp.pop %v1067
    %v1069 = vmul.f32 %v1067, %v1068
    %v1070 = vsub.f32 1.0, %v1069
    %v1071 = vmul.f32 %v1068, %v1070
    %v1072 = vadd.f32 %v1068, %v1071
    %vm1073 = vweird.f32 %v1067
    %vm1074 = vweird.f32 %v1068
    %vm1075 = vmor %vm1073, %vm1074
    %v1076 = vsel %vm1075, %v1068, %v1072
    %v1077 = vand.u32 2147483647, %v1067
    %vm1078 = vcmp.eq.f32.partialorder %v1077, 8.507059e+37
    %v1079 = vand.u32 %v1067, 2147483648
    %v1080 = vor.u32 1.1754944e-38, %v1079
    %v1081 = vsel %vm1078, %v1080, %v1076
    %v1082 = vmul.f32 1.0, %v1081
    %v1083 = vtanh.pop %v1062
    %v1084 = vmul.f32 %v1082, %v931
    %1086 = vrot.lane.b32.xlu0 %v1083, 64
    %v1087 = vpop.permute.xlu0 %1086
    %v1089 = vmul.f32 %v1082, %v1087
    %1091 = vrot.lane.b32.xlu0 %v1089, 32
    %v1092 = vpop.permute.xlu0 %1091
    %v1094 = vadd.f32 %v1084, %v1092
    %v1095 = vtanh.pop %v1094
    %1097 = vrot.lane.b32.xlu0 %v1095, 64
    %v1098 = vpop.permute.xlu0 %1097
    %v1100 = vmul.f32 %v1082, %v1098
    %v1101 = vld [vmem:[#allocation14] sm:$0xff]
    %v1102 = vld [vmem:[#allocation14 + $0x8] sm:$0xff]
    %v1103 = vld [vmem:[#allocation14 + $0x10] sm:$0xff]
    %v1104 = vld [vmem:[#allocation14 + $0x18] sm:$0xff]
    %v1105 = vld [vmem:[#allocation12] sm:$0xff]
    %v1106 = vld [vmem:[#allocation12 + $0x8] sm:$0xff]
    %v1107 = vld [vmem:[#allocation12 + $0x10] sm:$0xff]
    %v1108 = vld [vmem:[#allocation12 + $0x18] sm:$0xff]
    %1110 = vrot.lane.b32.xlu0 %v1100, 32
    %v1111 = vpop.permute.xlu0 %1110
    %v1112 = vsel %vm131, %v1111, 0
    %1114 = vmatpush.msra.mxu0 0.0
    %1115 = vmatpush.msra.mxu0 0.0
    %1116 = vmatpush.msra.mxu0 0.0
    %1117 = vmatpush.msra.mxu0 0.0
    %1118 = vmatpush.msra.mxu0 0.0
    %1119 = vmatpush.msra.mxu0 0.0
    %1120 = vmatpush.msra.mxu0 0.0
    %1121 = vmatpush.msra.mxu0 0.0
    %1122 = vmatpush.msra.mxu0 0.0
    %1123 = vmatpush.msra.mxu0 0.0
    %1124 = vmatpush.msra.mxu0 0.0
    %1125 = vmatpush.msra.mxu0 0.0
    %1126 = vmatpush.msra.mxu0 %v1108
    %1127 = vmatpush.msra.mxu0 %v1107
    %1128 = vmatpush.msra.mxu0 %v1106
    %1129 = vmatpush.msra.mxu0 %v1105
    %1130 = vmatmul.f32.gmra.mxu0 %v1112
    %v1131 = vpop.f32.mrf.mxu0
    %v1132 = vadd.f32 0.0, %v1131
    %1133 = vdwg.mxu0
    %v1134 = vsel %vm131, %v1036, 0
    %1136 = vmatpush.msra.mxu0 0.0
    %1137 = vmatpush.msra.mxu0 0.0
    %1138 = vmatpush.msra.mxu0 0.0
    %1139 = vmatpush.msra.mxu0 0.0
    %1140 = vmatpush.msra.mxu0 0.0
    %1141 = vmatpush.msra.mxu0 0.0
    %1142 = vmatpush.msra.mxu0 0.0
    %1143 = vmatpush.msra.mxu0 0.0
    %1144 = vmatpush.msra.mxu0 0.0
    %1145 = vmatpush.msra.mxu0 0.0
    %1146 = vmatpush.msra.mxu0 0.0
    %1147 = vmatpush.msra.mxu0 0.0
    %1148 = vmatpush.msra.mxu0 %v1104
    %1149 = vmatpush.msra.mxu0 %v1103
    %1150 = vmatpush.msra.mxu0 %v1102
    %1151 = vmatpush.msra.mxu0 %v1101
    %1152 = vmatmul.f32.gmra.mxu0 %v1134
    %v1153 = vpop.f32.mrf.mxu0
    %v1154 = vadd.f32 %v1132, %v1153
    %1155 = vdwg.mxu0
    %v1156 = vadd.f32 %v1154, %v229
    %v1157 = vxor.u32 %v1156, 2147483648
    %v1158 = vmul.f32 %v1157, 1.442695
    %v1159 = vpow.pop %v1158
    %v1160 = vadd.f32 %v1159, 1.0
    %v1161 = vrcp.pop %v1160
    %v1162 = vmul.f32 %v1160, %v1161
    %v1163 = vsub.f32 1.0, %v1162
    %v1164 = vmul.f32 %v1161, %v1163
    %v1165 = vadd.f32 %v1161, %v1164
    %vm1166 = vweird.f32 %v1160
    %vm1167 = vweird.f32 %v1161
    %vm1168 = vmor %vm1166, %vm1167
    %v1169 = vsel %vm1168, %v1161, %v1165
    %v1170 = vand.u32 2147483647, %v1160
    %vm1171 = vcmp.eq.f32.partialorder %v1170, 8.507059e+37
    %v1172 = vand.u32 %v1160, 2147483648
    %v1173 = vor.u32 1.1754944e-38, %v1172
    %v1174 = vsel %vm1171, %v1173, %v1169
    %v1175 = vmul.f32 1.0, %v1174
    %v1176 = vtanh.pop %v1156
    %v1177 = vmul.f32 %v1175, %v1027
    %1179 = vrot.lane.b32.xlu0 %v1176, 64
    %v1180 = vpop.permute.xlu0 %1179
    %v1182 = vmul.f32 %v1175, %v1180
    %1184 = vrot.lane.b32.xlu0 %v1182, 32
    %v1185 = vpop.permute.xlu0 %1184
    %v1187 = vadd.f32 %v1177, %v1185
    %v1188 = vtanh.pop %v1187
    %1190 = vrot.lane.b32.xlu0 %v1188, 64
    %v1191 = vpop.permute.xlu0 %1190
    %v1193 = vmul.f32 %v1175, %v1191
    %1195 = vrot.lane.b32.xlu0 %v1193, 64
    %v1196 = vpop.permute.xlu0 %1195
    %1198 = vst.msk [vmem:[#allocation15 + $0x2] sm:$0x3] %vm552, %v1196
    %v1199 = vld [vmem:[#allocation11] sm:$0xff]
    %v1200 = vld [vmem:[#allocation11 + $0x8] sm:$0xff]
    %v1201 = vld [vmem:[#allocation11 + $0x10] sm:$0xff]
    %v1202 = vld [vmem:[#allocation11 + $0x18] sm:$0xff]
    %v1203 = vld [vmem:[#allocation3 + $0xc] sm:$0x3]
    %1204 = vmatpush.msra.mxu0 0.0
    %1205 = vmatpush.msra.mxu0 0.0
    %1206 = vmatpush.msra.mxu0 0.0
    %1207 = vmatpush.msra.mxu0 0.0
    %1208 = vmatpush.msra.mxu0 0.0
    %1209 = vmatpush.msra.mxu0 0.0
    %1210 = vmatpush.msra.mxu0 0.0
    %1211 = vmatpush.msra.mxu0 0.0
    %1212 = vmatpush.msra.mxu0 0.0
    %1213 = vmatpush.msra.mxu0 0.0
    %1214 = vmatpush.msra.mxu0 0.0
    %1215 = vmatpush.msra.mxu0 0.0
    %1216 = vmatpush.msra.mxu0 %v1202
    %1217 = vmatpush.msra.mxu0 %v1201
    %1218 = vmatpush.msra.mxu0 %v1200
    %1219 = vmatpush.msra.mxu0 %v1199
    %1220 = vmatmul.f32.gmra.mxu0 %v1112
    %v1221 = vpop.f32.mrf.mxu0
    %v1222 = vadd.f32 %v1203, %v1221
    %1223 = vdwg.mxu0
    %v1224 = vxor.u32 %v1222, 2147483648
    %v1225 = vmul.f32 %v1224, 1.442695
    %v1226 = vpow.pop %v1225
    %v1227 = vadd.f32 %v1226, 1.0
    %v1228 = vrcp.pop %v1227
    %v1229 = vmul.f32 %v1227, %v1228
    %v1230 = vsub.f32 1.0, %v1229
    %v1231 = vmul.f32 %v1228, %v1230
    %v1232 = vadd.f32 %v1228, %v1231
    %vm1233 = vweird.f32 %v1227
    %vm1234 = vweird.f32 %v1228
    %vm1235 = vmor %vm1233, %vm1234
    %v1236 = vsel %vm1235, %v1228, %v1232
    %v1237 = vand.u32 2147483647, %v1227
    %vm1238 = vcmp.eq.f32.partialorder %v1237, 8.507059e+37
    %v1239 = vand.u32 %v1227, 2147483648
    %v1240 = vor.u32 1.1754944e-38, %v1239
    %v1241 = vsel %vm1238, %v1240, %v1236
    %v1242 = vmul.f32 1.0, %v1241
    %v1243 = vtanh.pop %v1222
    %v1244 = vmul.f32 %v1242, %v1094
    %1246 = vrot.lane.b32.xlu0 %v1243, 64
    %v1247 = vpop.permute.xlu0 %1246
    %v1249 = vmul.f32 %v1242, %v1247
    %1251 = vrot.lane.b32.xlu0 %v1249, 32
    %v1252 = vpop.permute.xlu0 %1251
    %v1254 = vadd.f32 %v1244, %v1252
    %v1255 = vtanh.pop %v1254
    %1257 = vrot.lane.b32.xlu0 %v1255, 64
    %v1258 = vpop.permute.xlu0 %1257
    %v1260 = vmul.f32 %v1242, %v1258
    %v1261 = vld [vmem:[#allocation14] sm:$0xff]
    %v1262 = vld [vmem:[#allocation14 + $0x8] sm:$0xff]
    %v1263 = vld [vmem:[#allocation14 + $0x10] sm:$0xff]
    %v1264 = vld [vmem:[#allocation14 + $0x18] sm:$0xff]
    %v1265 = vld [vmem:[#allocation12] sm:$0xff]
    %v1266 = vld [vmem:[#allocation12 + $0x8] sm:$0xff]
    %v1267 = vld [vmem:[#allocation12 + $0x10] sm:$0xff]
    %v1268 = vld [vmem:[#allocation12 + $0x18] sm:$0xff]
    %1270 = vrot.lane.b32.xlu0 %v1260, 32
    %v1271 = vpop.permute.xlu0 %1270
    %v1272 = vsel %vm131, %v1271, 0
    %1274 = vmatpush.msra.mxu0 0.0
    %1275 = vmatpush.msra.mxu0 0.0
    %1276 = vmatpush.msra.mxu0 0.0
    %1277 = vmatpush.msra.mxu0 0.0
    %1278 = vmatpush.msra.mxu0 0.0
    %1279 = vmatpush.msra.mxu0 0.0
    %1280 = vmatpush.msra.mxu0 0.0
    %1281 = vmatpush.msra.mxu0 0.0
    %1282 = vmatpush.msra.mxu0 0.0
    %1283 = vmatpush.msra.mxu0 0.0
    %1284 = vmatpush.msra.mxu0 0.0
    %1285 = vmatpush.msra.mxu0 0.0
    %1286 = vmatpush.msra.mxu0 %v1268
    %1287 = vmatpush.msra.mxu0 %v1267
    %1288 = vmatpush.msra.mxu0 %v1266
    %1289 = vmatpush.msra.mxu0 %v1265
    %1290 = vmatmul.f32.gmra.mxu0 %v1272
    %v1291 = vpop.f32.mrf.mxu0
    %v1292 = vadd.f32 0.0, %v1291
    %1293 = vdwg.mxu0
    %1294 = vrot.lane.b32.xlu0 %v1193, 32
    %v1295 = vpop.permute.xlu0 %1294
    %v1296 = vsel %vm131, %v1295, 0
    %1298 = vmatpush.msra.mxu0 0.0
    %1299 = vmatpush.msra.mxu0 0.0
    %1300 = vmatpush.msra.mxu0 0.0
    %1301 = vmatpush.msra.mxu0 0.0
    %1302 = vmatpush.msra.mxu0 0.0
    %1303 = vmatpush.msra.mxu0 0.0
    %1304 = vmatpush.msra.mxu0 0.0
    %1305 = vmatpush.msra.mxu0 0.0
    %1306 = vmatpush.msra.mxu0 0.0
    %1307 = vmatpush.msra.mxu0 0.0
    %1308 = vmatpush.msra.mxu0 0.0
    %1309 = vmatpush.msra.mxu0 0.0
    %1310 = vmatpush.msra.mxu0 %v1264
    %1311 = vmatpush.msra.mxu0 %v1263
    %1312 = vmatpush.msra.mxu0 %v1262
    %1313 = vmatpush.msra.mxu0 %v1261
    %1314 = vmatmul.f32.gmra.mxu0 %v1296
    %v1315 = vpop.f32.mrf.mxu0
    %v1316 = vadd.f32 %v1292, %v1315
    %1317 = vdwg.mxu0
    %v1318 = vadd.f32 %v1316, %v229
    %v1319 = vxor.u32 %v1318, 2147483648
    %v1320 = vmul.f32 %v1319, 1.442695
    %v1321 = vpow.pop %v1320
    %v1322 = vadd.f32 %v1321, 1.0
    %v1323 = vrcp.pop %v1322
    %v1324 = vmul.f32 %v1322, %v1323
    %v1325 = vsub.f32 1.0, %v1324
    %v1326 = vmul.f32 %v1323, %v1325
    %v1327 = vadd.f32 %v1323, %v1326
    %vm1328 = vweird.f32 %v1322
    %vm1329 = vweird.f32 %v1323
    %vm1330 = vmor %vm1328, %vm1329
    %v1331 = vsel %vm1330, %v1323, %v1327
    %v1332 = vand.u32 2147483647, %v1322
    %vm1333 = vcmp.eq.f32.partialorder %v1332, 8.507059e+37
    %v1334 = vand.u32 %v1322, 2147483648
    %v1335 = vor.u32 1.1754944e-38, %v1334
    %v1336 = vsel %vm1333, %v1335, %v1331
    %v1337 = vmul.f32 1.0, %v1336
    %v1338 = vtanh.pop %v1318
    %v1339 = vmul.f32 %v1337, %v1187
    %1341 = vrot.lane.b32.xlu0 %v1338, 64
    %v1342 = vpop.permute.xlu0 %1341
    %v1344 = vmul.f32 %v1337, %v1342
    %1346 = vrot.lane.b32.xlu0 %v1344, 32
    %v1347 = vpop.permute.xlu0 %1346
    %v1349 = vadd.f32 %v1339, %v1347
    %v1350 = vtanh.pop %v1349
    %1352 = vrot.lane.b32.xlu0 %v1350, 64
    %v1353 = vpop.permute.xlu0 %1352
    %v1355 = vmul.f32 %v1337, %v1353
    %1357 = vrot.lane.b32.xlu0 %v1355, 96
    %v1358 = vpop.permute.xlu0 %1357
    %1360 = vst.msk [vmem:[#allocation15 + $0x2] sm:$0x3] %vm715, %v1358
    %v1361 = vld [vmem:[#allocation11] sm:$0xff]
    %v1362 = vld [vmem:[#allocation11 + $0x8] sm:$0xff]
    %v1363 = vld [vmem:[#allocation11 + $0x10] sm:$0xff]
    %v1364 = vld [vmem:[#allocation11 + $0x18] sm:$0xff]
    %v1365 = vld [vmem:[#allocation3 + $0xe] sm:$0x3]
    %1366 = vmatpush.msra.mxu0 0.0
    %1367 = vmatpush.msra.mxu0 0.0
    %1368 = vmatpush.msra.mxu0 0.0
    %1369 = vmatpush.msra.mxu0 0.0
    %1370 = vmatpush.msra.mxu0 0.0
    %1371 = vmatpush.msra.mxu0 0.0
    %1372 = vmatpush.msra.mxu0 0.0
    %1373 = vmatpush.msra.mxu0 0.0
    %1374 = vmatpush.msra.mxu0 0.0
    %1375 = vmatpush.msra.mxu0 0.0
    %1376 = vmatpush.msra.mxu0 0.0
    %1377 = vmatpush.msra.mxu0 0.0
    %1378 = vmatpush.msra.mxu0 %v1364
    %1379 = vmatpush.msra.mxu0 %v1363
    %1380 = vmatpush.msra.mxu0 %v1362
    %1381 = vmatpush.msra.mxu0 %v1361
    %1382 = vmatmul.f32.gmra.mxu0 %v1272
    %v1383 = vpop.f32.mrf.mxu0
    %v1384 = vadd.f32 %v1365, %v1383
    %1385 = vdwg.mxu0
    %v1386 = vxor.u32 %v1384, 2147483648
    %v1387 = vmul.f32 %v1386, 1.442695
    %v1388 = vpow.pop %v1387
    %v1389 = vadd.f32 %v1388, 1.0
    %v1390 = vrcp.pop %v1389
    %v1391 = vmul.f32 %v1389, %v1390
    %v1392 = vsub.f32 1.0, %v1391
    %v1393 = vmul.f32 %v1390, %v1392
    %v1394 = vadd.f32 %v1390, %v1393
    %vm1395 = vweird.f32 %v1389
    %vm1396 = vweird.f32 %v1390
    %vm1397 = vmor %vm1395, %vm1396
    %v1398 = vsel %vm1397, %v1390, %v1394
    %v1399 = vand.u32 2147483647, %v1389
    %vm1400 = vcmp.eq.f32.partialorder %v1399, 8.507059e+37
    %v1401 = vand.u32 %v1389, 2147483648
    %v1402 = vor.u32 1.1754944e-38, %v1401
    %v1403 = vsel %vm1400, %v1402, %v1398
    %v1404 = vmul.f32 1.0, %v1403
    %v1405 = vtanh.pop %v1384
    %v1406 = vmul.f32 %v1404, %v1254
    %1408 = vrot.lane.b32.xlu0 %v1405, 64
    %v1409 = vpop.permute.xlu0 %1408
    %v1411 = vmul.f32 %v1404, %v1409
    %1413 = vrot.lane.b32.xlu0 %v1411, 32
    %v1414 = vpop.permute.xlu0 %1413
    %v1416 = vadd.f32 %v1406, %v1414
    %v1417 = vtanh.pop %v1416
    %1419 = vrot.lane.b32.xlu0 %v1417, 64
    %v1420 = vpop.permute.xlu0 %1419
    %v1422 = vmul.f32 %v1404, %v1420
    %v1423 = vld [vmem:[#allocation14] sm:$0xff]
    %v1424 = vld [vmem:[#allocation14 + $0x8] sm:$0xff]
    %v1425 = vld [vmem:[#allocation14 + $0x10] sm:$0xff]
    %v1426 = vld [vmem:[#allocation14 + $0x18] sm:$0xff]
    %v1427 = vld [vmem:[#allocation12] sm:$0xff]
    %v1428 = vld [vmem:[#allocation12 + $0x8] sm:$0xff]
    %v1429 = vld [vmem:[#allocation12 + $0x10] sm:$0xff]
    %v1430 = vld [vmem:[#allocation12 + $0x18] sm:$0xff]
    %1432 = vrot.lane.b32.xlu0 %v1422, 32
    %v1433 = vpop.permute.xlu0 %1432
    %v1434 = vsel %vm131, %v1433, 0
    %1436 = vmatpush.msra.mxu0 0.0
    %1437 = vmatpush.msra.mxu0 0.0
    %1438 = vmatpush.msra.mxu0 0.0
    %1439 = vmatpush.msra.mxu0 0.0
    %1440 = vmatpush.msra.mxu0 0.0
    %1441 = vmatpush.msra.mxu0 0.0
    %1442 = vmatpush.msra.mxu0 0.0
    %1443 = vmatpush.msra.mxu0 0.0
    %1444 = vmatpush.msra.mxu0 0.0
    %1445 = vmatpush.msra.mxu0 0.0
    %1446 = vmatpush.msra.mxu0 0.0
    %1447 = vmatpush.msra.mxu0 0.0
    %1448 = vmatpush.msra.mxu0 %v1430
    %1449 = vmatpush.msra.mxu0 %v1429
    %1450 = vmatpush.msra.mxu0 %v1428
    %1451 = vmatpush.msra.mxu0 %v1427
    %1452 = vmatmul.f32.gmra.mxu0 %v1434
    %v1453 = vpop.f32.mrf.mxu0
    %v1454 = vadd.f32 0.0, %v1453
    %1455 = vdwg.mxu0
    %1456 = vrot.lane.b32.xlu0 %v1355, 32
    %v1457 = vpop.permute.xlu0 %1456
    %v1458 = vsel %vm131, %v1457, 0
    %1460 = vmatpush.msra.mxu0 0.0
    %1461 = vmatpush.msra.mxu0 0.0
    %1462 = vmatpush.msra.mxu0 0.0
    %1463 = vmatpush.msra.mxu0 0.0
    %1464 = vmatpush.msra.mxu0 0.0
    %1465 = vmatpush.msra.mxu0 0.0
    %1466 = vmatpush.msra.mxu0 0.0
    %1467 = vmatpush.msra.mxu0 0.0
    %1468 = vmatpush.msra.mxu0 0.0
    %1469 = vmatpush.msra.mxu0 0.0
    %1470 = vmatpush.msra.mxu0 0.0
    %1471 = vmatpush.msra.mxu0 0.0
    %1472 = vmatpush.msra.mxu0 %v1426
    %1473 = vmatpush.msra.mxu0 %v1425
    %1474 = vmatpush.msra.mxu0 %v1424
    %1475 = vmatpush.msra.mxu0 %v1423
    %1476 = vmatmul.f32.gmra.mxu0 %v1458
    %v1477 = vpop.f32.mrf.mxu0
    %v1478 = vadd.f32 %v1454, %v1477
    %1479 = vdwg.mxu0
    %v1480 = vadd.f32 %v1478, %v229
    %v1481 = vxor.u32 %v1480, 2147483648
    %v1482 = vmul.f32 %v1481, 1.442695
    %v1483 = vpow.pop %v1482
    %v1484 = vadd.f32 %v1483, 1.0
    %v1485 = vrcp.pop %v1484
    %v1486 = vmul.f32 %v1484, %v1485
    %v1487 = vsub.f32 1.0, %v1486
    %v1488 = vmul.f32 %v1485, %v1487
    %v1489 = vadd.f32 %v1485, %v1488
    %vm1490 = vweird.f32 %v1484
    %vm1491 = vweird.f32 %v1485
    %vm1492 = vmor %vm1490, %vm1491
    %v1493 = vsel %vm1492, %v1485, %v1489
    %v1494 = vand.u32 2147483647, %v1484
    %vm1495 = vcmp.eq.f32.partialorder %v1494, 8.507059e+37
    %v1496 = vand.u32 %v1484, 2147483648
    %v1497 = vor.u32 1.1754944e-38, %v1496
    %v1498 = vsel %vm1495, %v1497, %v1493
    %v1499 = vmul.f32 1.0, %v1498
    %v1500 = vtanh.pop %v1480
    %v1501 = vmul.f32 %v1499, %v1349
    %1503 = vrot.lane.b32.xlu0 %v1500, 64
    %v1504 = vpop.permute.xlu0 %1503
    %v1506 = vmul.f32 %v1499, %v1504
    %1508 = vrot.lane.b32.xlu0 %v1506, 32
    %v1509 = vpop.permute.xlu0 %1508
    %v1511 = vadd.f32 %v1501, %v1509
    %v1512 = vtanh.pop %v1511
    %1514 = vrot.lane.b32.xlu0 %v1512, 64
    %v1515 = vpop.permute.xlu0 %1514
    %v1517 = vmul.f32 %v1499, %v1515
    %1518 = vst.msk [vmem:[#allocation15 + $0x2] sm:$0x3] %vm874, %v1517
    // Predicated region
    $region58: #{tpu_custom_call.1} parent=1 // pred_check
      _
    $region59: #{tpu_custom_call.1} parent=1 // pred_check_branch
      %1520 = sbr.rel (0) target = $region61
    $region60: #{tpu_custom_call.1} parent=1 // pred_region
      %1522 = vsyncadd [#allocation6], 0
      %s1524 = sshll.u32 [#allocation15], 4
      %s1525 = int_to_ptr.vmem [resolvable:$true] %s1524
      %s1526 = sshll.u32 %s8, 4
      %s1527 = int_to_ptr.hbm [resolvable:$true] %s1526
      %1529 = dma.vmem_to_hbm [thread:$0]  %s1525, 64, %s1527, [#allocation6]
    $region61: #{tpu_custom_call.1} parent=1 // pred_fallthru
      _
    // Predicated region
    $region62: #{tpu_custom_call.1} parent=1 // pred_check
      _
    $region63: #{tpu_custom_call.1} parent=1 // pred_check_branch
      %1531 = sbr.rel (0) target = $region65
    $region64: #{tpu_custom_call.1} parent=1 // pred_region
      %1533 = dma.done [#allocation6], 64
    $region65: #{tpu_custom_call.1} parent=1 // pred_fallthru
      _
    %1534 = vsyncpa [#allocation5], 1
    %1535 = vsyncpa [#allocation10], 1
    %1536 = vsyncpa [#allocation13], 1
    %1537 = vsyncpa [#allocation6], 1
    %1538 = vsyncpa [#allocation7], 1

</llo_original>
